<compile_context>
chip_gen: v6e
topology: v6e:2x2x1
jax: 0.10.0
libtpu: 0.0.40
codegen_flags: <defaults>
</compile_context>

<pallas_src>
import functools

import jax
import jax.numpy as jnp
from jax.experimental import pallas as pl
from jax.experimental.pallas import tpu as pltpu


HIDDEN = 128


def _round_up(x, m):
    return ((x + m - 1) // m) * m


def _low_level_kernel(state_ref, neigh_ref, w0s_ref, w0a_ref, w0d_ref, b0_ref,
                      w1_ref, b1_ref, wp_ref,
                      v0_ref, c0_ref, v1_ref, c1_ref, vb_ref, bias_ref,
                      logits_ref, baseline_ref, action_ref,
                      *, num_neighbors, num_ratios, block_rows):
    f32 = jnp.float32
    bf16 = jnp.bfloat16
    Nn, R, tb = num_neighbors, num_ratios, block_rows
    na = Nn * R

    state_bf = state_ref[...].astype(bf16)                                # (tb, S)

    # ---------------- policy head ----------------
    # Layer 0, decomposed:  x @ W0 = state@W0[:S] + neighbor@W0[S:S+A] + W0[S+A+r] + b0.
    sh = jnp.dot(state_bf, w0s_ref[...], preferred_element_type=f32) + b0_ref[...]   # (tb, H)
    # All Nn neighbor layer-0 contributions in a single MXU pass (free leading-dim collapse).
    neigh_flat = neigh_ref[...].reshape(Nn * tb, -1)                      # (Nn*tb, A) bf16
    nh = jnp.dot(neigh_flat, w0a_ref[...], preferred_element_type=f32)    # (Nn*tb, H) f32

    w0d = w0d_ref[...]      # (R, H)  f32: one-hot distance block of W0 == row select
    w1 = w1_ref[...]        # (H, H)  bf16
    b1 = b1_ref[...]        # (1, H)  f32
    wp = wp_ref[...]        # (1, H)  f32 policy projection vector
    b2 = bias_ref[0]        # SMEM scalar: policy bias

    # TODO(synk): switch to lax.fori_loop over neighbors for very large Nn (vreg pressure).
    cols = []
    for nn in range(Nn):
        base = sh + nh[nn * tb:(nn + 1) * tb]                             # (tb, H) f32
        # All R ratio branches of layer 1 in one dot: one W1 load / one MXU drain.
        h0 = jnp.maximum(base[None, :, :] + w0d[:, None, :], 0.0)         # (R, tb, H)
        h0 = h0.reshape(R * tb, HIDDEN).astype(bf16)
        h1 = jnp.maximum(
            jnp.dot(h0, w1, preferred_element_type=f32) + b1, 0.0)        # (R*tb, H) f32
        # Final (H -> 1) projection as an f32 VPU/XLU reduce: no MXU pass, no bf16 rounding.
        for r in range(R):
            h1r = h1[r * tb:(r + 1) * tb]                                 # (tb, H)
            cols.append(jnp.sum(h1r * wp, axis=-1, keepdims=True) + b2)   # (tb, 1)

    # Column index = nn*R + r (matches the torch layout); single lane-packed store.
    logits = jnp.concatenate(cols, axis=-1)                               # (tb, Nn*R)
    logits_ref[...] = logits

    # Fused eval-mode argmax: first column index attaining the row max.
    col_ids = jax.lax.broadcasted_iota(jnp.int32, logits.shape, 1)
    row_max = jnp.max(logits, axis=-1, keepdims=True)
    action_ref[...] = jnp.min(
        jnp.where(logits == row_max, col_ids, na), axis=-1, keepdims=True)

    # ---------------- value head (once per row tile) ----------------
    vh = jnp.maximum(
        jnp.dot(state_bf, v0_ref[...], preferred_element_type=f32) + c0_ref[...], 0.0)
    vh = jnp.maximum(
        jnp.dot(vh.astype(bf16), v1_ref[...], preferred_element_type=f32) + c1_ref[...], 0.0)
    baseline_ref[...] = jnp.sum(vh * vb_ref[...], axis=-1, keepdims=True) + bias_ref[1]


def init_linear(key, fan_in, fan_out):
    """PyTorch nn.Linear default init: U(-1/sqrt(fan_in), 1/sqrt(fan_in)).
    W is stored transposed as (fan_in, fan_out) for x @ W."""
    kw, kb = jax.random.split(key)
    bound = 1.0 / jnp.sqrt(float(fan_in))
    w = jax.random.uniform(kw, (fan_in, fan_out), jnp.float32, -bound, bound)
    b = jax.random.uniform(kb, (1, fan_out), jnp.float32, -bound, bound)
    return w, b


def init_params(key, state_dim, action_dim, num_ratios):
    keys = jax.random.split(key, 6)
    p_in = state_dim + action_dim + num_ratios
    return dict(
        p_fc_0=init_linear(keys[0], p_in, HIDDEN),
        p_fc_1=init_linear(keys[1], HIDDEN, HIDDEN),
        policy=init_linear(keys[2], HIDDEN, 1),
        v_fc_0=init_linear(keys[3], state_dim, HIDDEN),
        v_fc_1=init_linear(keys[4], HIDDEN, HIDDEN),
        baseline=init_linear(keys[5], HIDDEN, 1),
    )


@functools.partial(jax.jit, static_argnames=("num_ratios",))
def low_level_net_forward(params, src_features, neighbor_features, num_ratios):
    """Forward pass matching LowLevelNet.forward in eval mode.

    src_features:      (T, B, state_dim)          float32
    neighbor_features: (T, B, num_neighbors, A)   float32
    Returns dict(policy_logits=(T,B,num_actions), baseline=(T,B), action=(T,B) int32).
    """
    T, B, S = src_features.shape
    _, _, Nn, A = neighbor_features.shape
    R = num_ratios
    Na = Nn * R
    TB = T * B
    H = HIDDEN
    bf16 = jnp.bfloat16

    # Row tile: big enough to feed the MXU, multiple of 16 (bf16 sublane packing).
    # For 256 < TB <= 512 force exactly two tiles so the "parallel" axis feeds both v7x TCs.
    if TB <= 256:
        tb = _round_up(TB, 16)
    elif TB <= 512:
        tb = _round_up((TB + 1) // 2, 16)
    else:
        tb = 256
    TBp = _round_up(TB, tb)

    state = src_features.reshape(TB, S)
    neigh = neighbor_features.reshape(TB, Nn, A)
    if TBp != TB:
        state = jnp.pad(state, ((0, TBp - TB), (0, 0)))
        neigh = jnp.pad(neigh, ((0, TBp - TB), (0, 0), (0, 0)))
    # (Nn, TBp, A): the kernel slices whole (Nn, tb, A) row-tiles (no per-step relayout).
    neigh_t = jnp.transpose(neigh, (1, 0, 2)).astype(bf16)

    w0, b0 = params["p_fc_0"]          # (S+A+R, H), (1, H)
    w1, b1 = params["p_fc_1"]          # (H, H), (1, H)
    wp, bp = params["policy"]          # (H, 1), (1, 1)
    v0, c0 = params["v_fc_0"]          # (S, H), (1, H)
    v1, c1 = params["v_fc_1"]          # (H, H), (1, H)
    vb, cb = params["baseline"]        # (H, 1), (1, 1)

    w0s = w0[:S].astype(bf16)          # state rows of W0
    w0a = w0[S:S + A].astype(bf16)     # neighbor rows of W0
    w0d = w0[S + A:]                   # (R, H) f32: one-hot distance block == row select
    wp_row = wp.reshape(1, H)          # f32 vector for the in-kernel VPU reduce
    vb_row = vb.reshape(1, H)
    scalar_biases = jnp.concatenate([bp.reshape(-1), cb.reshape(-1)]).astype(jnp.float32)

    kernel = functools.partial(_low_level_kernel, num_neighbors=Nn,
                               num_ratios=R, block_rows=tb)
    grid = (TBp // tb,)

    pol, base, act = pl.pallas_call(
        kernel,
        out_shape=(jax.ShapeDtypeStruct((TBp, Na), jnp.float32),
                   jax.ShapeDtypeStruct((TBp, 1), jnp.float32),
                   jax.ShapeDtypeStruct((TBp, 1), jnp.int32)),
        grid_spec=pltpu.PrefetchScalarGridSpec(
            num_scalar_prefetch=0,
            grid=grid,
            in_specs=[
                pl.BlockSpec((tb, S), lambda i: (i, 0)),           # state rows (f32)
                pl.BlockSpec((Nn, tb, A), lambda i: (0, i, 0)),    # neighbors (bf16)
                pl.BlockSpec((S, H), lambda i: (0, 0)),            # W0[:S]      (bf16)
                pl.BlockSpec((A, H), lambda i: (0, 0)),            # W0[S:S+A]   (bf16)
                pl.BlockSpec((R, H), lambda i: (0, 0)),            # W0[S+A:]    (f32)
                pl.BlockSpec((1, H), lambda i: (0, 0)),            # b0
                pl.BlockSpec((H, H), lambda i: (0, 0)),            # W1          (bf16)
                pl.BlockSpec((1, H), lambda i: (0, 0)),            # b1
                pl.BlockSpec((1, H), lambda i: (0, 0)),            # policy proj (f32)
                pl.BlockSpec((S, H), lambda i: (0, 0)),            # V0          (bf16)
                pl.BlockSpec((1, H), lambda i: (0, 0)),            # c0
                pl.BlockSpec((H, H), lambda i: (0, 0)),            # V1          (bf16)
                pl.BlockSpec((1, H), lambda i: (0, 0)),            # c1
                pl.BlockSpec((1, H), lambda i: (0, 0)),            # baseline proj (f32)
                pl.BlockSpec(memory_space=pltpu.MemorySpace.SMEM), # [policy bias, baseline bias]
            ],
            out_specs=[
                pl.BlockSpec((tb, Na), lambda i: (i, 0)),          # logits, final layout
                pl.BlockSpec((tb, 1), lambda i: (i, 0)),           # baseline
                pl.BlockSpec((tb, 1), lambda i: (i, 0)),           # argmax action (int32)
            ],
        ),
        compiler_params=pltpu.CompilerParams(dimension_semantics=("parallel",)),
    )(state, neigh_t, w0s, w0a, w0d, b0, w1.astype(bf16), b1, wp_row,
      v0.astype(bf16), c0, v1.astype(bf16), c1, vb_row, scalar_biases)

    # Padded rows (TBp > TB) carry garbage — slice them off before reshaping.
    return dict(
        policy_logits=pol[:TB].reshape(T, B, Na),
        baseline=base[:TB, 0].reshape(T, B),
        action=act[:TB, 0].reshape(T, B),
    )


def _reference_forward(params, src_features, neighbor_features, num_ratios):
    """Pure-JAX f32 reference following the original torch formulation."""
    T, B, S = src_features.shape
    _, _, Nn, A = neighbor_features.shape
    R = num_ratios
    Na = Nn * R
    TB = T * B

    state = src_features.reshape(TB, S)
    neigh = neighbor_features.reshape(TB * Nn, A)
    neigh_rep = jnp.repeat(neigh, R, axis=0)
    dist = jnp.tile(jnp.eye(R, dtype=jnp.float32), (TB * Nn, 1))
    x = jnp.concatenate(
        [jnp.repeat(state, Na, axis=0), neigh_rep, dist], axis=-1)

    def mlp3(z, p0, p1, p2):
        z = jnp.maximum(z @ p0[0] + p0[1], 0.0)
        z = jnp.maximum(z @ p1[0] + p1[1], 0.0)
        return z @ p2[0] + p2[1]

    logits = mlp3(x, params["p_fc_0"], params["p_fc_1"], params["policy"]).reshape(TB, Na)
    baseline = mlp3(state, params["v_fc_0"], params["v_fc_1"], params["baseline"])
    return logits.reshape(T, B, Na), baseline.reshape(T, B)


if __name__ == "__main__":
    # Small, deterministic example shapes.
    T, B = 2, 2
    state_dim = 16
    num_neighbors = 4
    action_dim = 8
    num_ratios = 2  # num_actions = 8

    key = jax.random.PRNGKey(0)
    k_params, k_src, k_nbr = jax.random.split(key, 3)

    params = init_params(k_params, state_dim, action_dim, num_ratios)
    src_features = jax.random.normal(k_src, (T, B, state_dim), jnp.float32)
    neighbor_features = jax.random.normal(
        k_nbr, (T, B, num_neighbors, action_dim), jnp.float32)

    out = low_level_net_forward(params, src_features, neighbor_features, num_ratios)
    jax.block_until_ready(out)

    ref_logits, ref_baseline = _reference_forward(
        params, src_features, neighbor_features, num_ratios)

    num_actions = num_neighbors * num_ratios
    assert out["policy_logits"].shape == (T, B, num_actions)
    assert out["baseline"].shape == (T, B)
    assert out["action"].shape == (T, B)
    assert out["action"].dtype == jnp.int32
    # bf16 MXU operands with f32 accumulation -> loosened tolerance vs. the f32 reference.
    assert jnp.allclose(out["policy_logits"], ref_logits, atol=3e-2, rtol=3e-2)
    assert jnp.allclose(out["baseline"], ref_baseline, atol=3e-2, rtol=3e-2)
    # Fused argmax must agree with argmax over the kernel's own logits.
    assert jnp.array_equal(
        out["action"].reshape(-1),
        jnp.argmax(out["policy_logits"].reshape(-1, num_actions), axis=1).astype(jnp.int32))

    print("KERNEL_OK")
</pallas_src>

<mosaic_0001>
module attributes {stable_mosaic.version = 11 : i64} {
  func.func @_low_level_kernel(%arg0: i32, %arg1: memref<16x16xf32, #tpu.memory_space<vmem>>, %arg2: memref<4x16x8xbf16, #tpu.memory_space<vmem>>, %arg3: memref<16x128xbf16, #tpu.memory_space<vmem>>, %arg4: memref<8x128xbf16, #tpu.memory_space<vmem>>, %arg5: memref<2x128xf32, #tpu.memory_space<vmem>>, %arg6: memref<1x128xf32, #tpu.memory_space<vmem>>, %arg7: memref<128x128xbf16, #tpu.memory_space<vmem>>, %arg8: memref<1x128xf32, #tpu.memory_space<vmem>>, %arg9: memref<1x128xf32, #tpu.memory_space<vmem>>, %arg10: memref<16x128xbf16, #tpu.memory_space<vmem>>, %arg11: memref<1x128xf32, #tpu.memory_space<vmem>>, %arg12: memref<128x128xbf16, #tpu.memory_space<vmem>>, %arg13: memref<1x128xf32, #tpu.memory_space<vmem>>, %arg14: memref<1x128xf32, #tpu.memory_space<vmem>>, %arg15: memref<2xf32, #tpu.memory_space<smem>>, %arg16: memref<16x8xf32, #tpu.memory_space<vmem>>, %arg17: memref<16x1xf32, #tpu.memory_space<vmem>>, %arg18: memref<16x1xi32, #tpu.memory_space<vmem>>) attributes {dimension_semantics = [#tpu.dimension_semantics<parallel>], iteration_bounds = array<i64: 1>, scalar_prefetch = 0 : i64, scratch_operands = 0 : i64, tpu.core_type = #tpu.core_type<tc>, window_params = [{transform_indices = @transform_0, window_bounds = array<i64: 16, 16>}, {transform_indices = @transform_1, window_bounds = array<i64: 4, 16, 8>}, {pipeline_mode = #tpu.pipeline_mode<synchronous>, transform_indices = @transform_2, window_bounds = array<i64: 16, 128>}, {pipeline_mode = #tpu.pipeline_mode<synchronous>, transform_indices = @transform_3, window_bounds = array<i64: 8, 128>}, {pipeline_mode = #tpu.pipeline_mode<synchronous>, transform_indices = @transform_4, window_bounds = array<i64: 2, 128>}, {pipeline_mode = #tpu.pipeline_mode<synchronous>, transform_indices = @transform_5, window_bounds = array<i64: 1, 128>}, {pipeline_mode = #tpu.pipeline_mode<synchronous>, transform_indices = @transform_6, window_bounds = array<i64: 128, 128>}, {pipeline_mode = #tpu.pipeline_mode<synchronous>, transform_indices = @transform_7, window_bounds = array<i64: 1, 128>}, {pipeline_mode = #tpu.pipeline_mode<synchronous>, transform_indices = @transform_8, window_bounds = array<i64: 1, 128>}, {pipeline_mode = #tpu.pipeline_mode<synchronous>, transform_indices = @transform_9, window_bounds = array<i64: 16, 128>}, {pipeline_mode = #tpu.pipeline_mode<synchronous>, transform_indices = @transform_10, window_bounds = array<i64: 1, 128>}, {pipeline_mode = #tpu.pipeline_mode<synchronous>, transform_indices = @transform_11, window_bounds = array<i64: 128, 128>}, {pipeline_mode = #tpu.pipeline_mode<synchronous>, transform_indices = @transform_12, window_bounds = array<i64: 1, 128>}, {pipeline_mode = #tpu.pipeline_mode<synchronous>, transform_indices = @transform_13, window_bounds = array<i64: 1, 128>}, {transform_indices = @transform_14, window_bounds = array<i64: 2>}, {transform_indices = @transform_15, window_bounds = array<i64: 16, 8>}, {transform_indices = @transform_16, window_bounds = array<i64: 16, 1>}, {transform_indices = @transform_17, window_bounds = array<i64: 16, 1>}]} {
    %c0 = arith.constant 0 : index
    %c0_0 = arith.constant 0 : index
    %0 = vector.load %arg1[%c0, %c0_0] : memref<16x16xf32, #tpu.memory_space<vmem>>, vector<16x16xf32>
    %1 = arith.truncf %0 : vector<16x16xf32> to vector<16x16xbf16>
    %c0_1 = arith.constant 0 : index
    %c0_2 = arith.constant 0 : index
    %2 = vector.load %arg3[%c0_1, %c0_2] : memref<16x128xbf16, #tpu.memory_space<vmem>>, vector<16x128xbf16>
    %cst = arith.constant dense<0.000000e+00> : vector<16x128xf32>
    %3 = tpu.matmul %1, %2, %cst {dimension_numbers = #tpu.dot_dimension_numbers<[1], [0], [0], [1], [0, 0, 1, 1], [], []>} : vector<16x16xbf16>, vector<16x128xbf16>, vector<16x128xf32> -> vector<16x128xf32>
    %c0_3 = arith.constant 0 : index
    %c0_4 = arith.constant 0 : index
    %4 = vector.load %arg6[%c0_3, %c0_4] : memref<1x128xf32, #tpu.memory_space<vmem>>, vector<1x128xf32>
    %5 = vector.broadcast %4 : vector<1x128xf32> to vector<16x128xf32>
    %6 = arith.addf %3, %5 : vector<16x128xf32>
    %c0_5 = arith.constant 0 : index
    %c0_6 = arith.constant 0 : index
    %c0_7 = arith.constant 0 : index
    %7 = vector.load %arg2[%c0_5, %c0_6, %c0_7] : memref<4x16x8xbf16, #tpu.memory_space<vmem>>, vector<4x16x8xbf16>
    %8 = vector.shape_cast %7 : vector<4x16x8xbf16> to vector<64x8xbf16>
    %c0_8 = arith.constant 0 : index
    %c0_9 = arith.constant 0 : index
    %9 = vector.load %arg4[%c0_8, %c0_9] : memref<8x128xbf16, #tpu.memory_space<vmem>>, vector<8x128xbf16>
    %cst_10 = arith.constant dense<0.000000e+00> : vector<64x128xf32>
    %10 = tpu.matmul %8, %9, %cst_10 {dimension_numbers = #tpu.dot_dimension_numbers<[1], [0], [0], [1], [0, 0, 1, 1], [], []>} : vector<64x8xbf16>, vector<8x128xbf16>, vector<64x128xf32> -> vector<64x128xf32>
    %c0_11 = arith.constant 0 : index
    %c0_12 = arith.constant 0 : index
    %11 = vector.load %arg5[%c0_11, %c0_12] : memref<2x128xf32, #tpu.memory_space<vmem>>, vector<2x128xf32>
    %c0_13 = arith.constant 0 : index
    %c0_14 = arith.constant 0 : index
    %12 = vector.load %arg7[%c0_13, %c0_14] : memref<128x128xbf16, #tpu.memory_space<vmem>>, vector<128x128xbf16>
    %c0_15 = arith.constant 0 : index
    %c0_16 = arith.constant 0 : index
    %13 = vector.load %arg8[%c0_15, %c0_16] : memref<1x128xf32, #tpu.memory_space<vmem>>, vector<1x128xf32>
    %c0_17 = arith.constant 0 : index
    %c0_18 = arith.constant 0 : index
    %14 = vector.load %arg9[%c0_17, %c0_18] : memref<1x128xf32, #tpu.memory_space<vmem>>, vector<1x128xf32>
    %c0_19 = arith.constant 0 : index
    %15 = memref.load %arg15[%c0_19] : memref<2xf32, #tpu.memory_space<smem>>
    %16 = vector.extract_strided_slice %10 {offsets = [0, 0], sizes = [16, 128], strides = [1, 1]} : vector<64x128xf32> to vector<16x128xf32>
    %17 = arith.addf %6, %16 : vector<16x128xf32>
    %18 = vector.shape_cast %17 : vector<16x128xf32> to vector<1x16x128xf32>
    %19 = vector.shape_cast %11 : vector<2x128xf32> to vector<2x1x128xf32>
    %20 = vector.broadcast %18 : vector<1x16x128xf32> to vector<2x16x128xf32>
    %21 = vector.broadcast %19 : vector<2x1x128xf32> to vector<2x16x128xf32>
    %22 = arith.addf %20, %21 : vector<2x16x128xf32>
    %cst_20 = arith.constant 0.000000e+00 : f32
    %23 = vector.broadcast %cst_20 : f32 to vector<2x16x128xf32>
    %24 = arith.maximumf %22, %23 : vector<2x16x128xf32>
    %25 = vector.shape_cast %24 : vector<2x16x128xf32> to vector<32x128xf32>
    %26 = arith.truncf %25 : vector<32x128xf32> to vector<32x128xbf16>
    %cst_21 = arith.constant dense<0.000000e+00> : vector<32x128xf32>
    %27 = tpu.matmul %26, %12, %cst_21 {dimension_numbers = #tpu.dot_dimension_numbers<[1], [0], [0], [1], [0, 0, 1, 1], [], []>} : vector<32x128xbf16>, vector<128x128xbf16>, vector<32x128xf32> -> vector<32x128xf32>
    %28 = vector.broadcast %13 : vector<1x128xf32> to vector<32x128xf32>
    %29 = arith.addf %27, %28 : vector<32x128xf32>
    %cst_22 = arith.constant 0.000000e+00 : f32
    %30 = vector.broadcast %cst_22 : f32 to vector<32x128xf32>
    %31 = arith.maximumf %29, %30 : vector<32x128xf32>
    %32 = vector.extract_strided_slice %31 {offsets = [0, 0], sizes = [16, 128], strides = [1, 1]} : vector<32x128xf32> to vector<16x128xf32>
    %33 = vector.broadcast %14 : vector<1x128xf32> to vector<16x128xf32>
    %34 = arith.mulf %32, %33 : vector<16x128xf32>
    %cst_23 = arith.constant dense<0.000000e+00> : vector<16xf32>
    %35 = vector.multi_reduction <add>, %34, %cst_23 [1] : vector<16x128xf32> to vector<16xf32>
    %36 = vector.shape_cast %35 : vector<16xf32> to vector<16x1xf32>
    %37 = vector.broadcast %15 : f32 to vector<16x1xf32>
    %38 = arith.addf %36, %37 : vector<16x1xf32>
    %39 = vector.extract_strided_slice %31 {offsets = [16, 0], sizes = [16, 128], strides = [1, 1]} : vector<32x128xf32> to vector<16x128xf32>
    %40 = vector.broadcast %14 : vector<1x128xf32> to vector<16x128xf32>
    %41 = arith.mulf %39, %40 : vector<16x128xf32>
    %cst_24 = arith.constant dense<0.000000e+00> : vector<16xf32>
    %42 = vector.multi_reduction <add>, %41, %cst_24 [1] : vector<16x128xf32> to vector<16xf32>
    %43 = vector.shape_cast %42 : vector<16xf32> to vector<16x1xf32>
    %44 = vector.broadcast %15 : f32 to vector<16x1xf32>
    %45 = arith.addf %43, %44 : vector<16x1xf32>
    %46 = vector.extract_strided_slice %10 {offsets = [16, 0], sizes = [16, 128], strides = [1, 1]} : vector<64x128xf32> to vector<16x128xf32>
    %47 = arith.addf %6, %46 : vector<16x128xf32>
    %48 = vector.shape_cast %47 : vector<16x128xf32> to vector<1x16x128xf32>
    %49 = vector.shape_cast %11 : vector<2x128xf32> to vector<2x1x128xf32>
    %50 = vector.broadcast %48 : vector<1x16x128xf32> to vector<2x16x128xf32>
    %51 = vector.broadcast %49 : vector<2x1x128xf32> to vector<2x16x128xf32>
    %52 = arith.addf %50, %51 : vector<2x16x128xf32>
    %cst_25 = arith.constant 0.000000e+00 : f32
    %53 = vector.broadcast %cst_25 : f32 to vector<2x16x128xf32>
    %54 = arith.maximumf %52, %53 : vector<2x16x128xf32>
    %55 = vector.shape_cast %54 : vector<2x16x128xf32> to vector<32x128xf32>
    %56 = arith.truncf %55 : vector<32x128xf32> to vector<32x128xbf16>
    %cst_26 = arith.constant dense<0.000000e+00> : vector<32x128xf32>
    %57 = tpu.matmul %56, %12, %cst_26 {dimension_numbers = #tpu.dot_dimension_numbers<[1], [0], [0], [1], [0, 0, 1, 1], [], []>} : vector<32x128xbf16>, vector<128x128xbf16>, vector<32x128xf32> -> vector<32x128xf32>
    %58 = vector.broadcast %13 : vector<1x128xf32> to vector<32x128xf32>
    %59 = arith.addf %57, %58 : vector<32x128xf32>
    %cst_27 = arith.constant 0.000000e+00 : f32
    %60 = vector.broadcast %cst_27 : f32 to vector<32x128xf32>
    %61 = arith.maximumf %59, %60 : vector<32x128xf32>
    %62 = vector.extract_strided_slice %61 {offsets = [0, 0], sizes = [16, 128], strides = [1, 1]} : vector<32x128xf32> to vector<16x128xf32>
    %63 = vector.broadcast %14 : vector<1x128xf32> to vector<16x128xf32>
    %64 = arith.mulf %62, %63 : vector<16x128xf32>
    %cst_28 = arith.constant dense<0.000000e+00> : vector<16xf32>
    %65 = vector.multi_reduction <add>, %64, %cst_28 [1] : vector<16x128xf32> to vector<16xf32>
    %66 = vector.shape_cast %65 : vector<16xf32> to vector<16x1xf32>
    %67 = vector.broadcast %15 : f32 to vector<16x1xf32>
    %68 = arith.addf %66, %67 : vector<16x1xf32>
    %69 = vector.extract_strided_slice %61 {offsets = [16, 0], sizes = [16, 128], strides = [1, 1]} : vector<32x128xf32> to vector<16x128xf32>
    %70 = vector.broadcast %14 : vector<1x128xf32> to vector<16x128xf32>
    %71 = arith.mulf %69, %70 : vector<16x128xf32>
    %cst_29 = arith.constant dense<0.000000e+00> : vector<16xf32>
    %72 = vector.multi_reduction <add>, %71, %cst_29 [1] : vector<16x128xf32> to vector<16xf32>
    %73 = vector.shape_cast %72 : vector<16xf32> to vector<16x1xf32>
    %74 = vector.broadcast %15 : f32 to vector<16x1xf32>
    %75 = arith.addf %73, %74 : vector<16x1xf32>
    %76 = vector.extract_strided_slice %10 {offsets = [32, 0], sizes = [16, 128], strides = [1, 1]} : vector<64x128xf32> to vector<16x128xf32>
    %77 = arith.addf %6, %76 : vector<16x128xf32>
    %78 = vector.shape_cast %77 : vector<16x128xf32> to vector<1x16x128xf32>
    %79 = vector.shape_cast %11 : vector<2x128xf32> to vector<2x1x128xf32>
    %80 = vector.broadcast %78 : vector<1x16x128xf32> to vector<2x16x128xf32>
    %81 = vector.broadcast %79 : vector<2x1x128xf32> to vector<2x16x128xf32>
    %82 = arith.addf %80, %81 : vector<2x16x128xf32>
    %cst_30 = arith.constant 0.000000e+00 : f32
    %83 = vector.broadcast %cst_30 : f32 to vector<2x16x128xf32>
    %84 = arith.maximumf %82, %83 : vector<2x16x128xf32>
    %85 = vector.shape_cast %84 : vector<2x16x128xf32> to vector<32x128xf32>
    %86 = arith.truncf %85 : vector<32x128xf32> to vector<32x128xbf16>
    %cst_31 = arith.constant dense<0.000000e+00> : vector<32x128xf32>
    %87 = tpu.matmul %86, %12, %cst_31 {dimension_numbers = #tpu.dot_dimension_numbers<[1], [0], [0], [1], [0, 0, 1, 1], [], []>} : vector<32x128xbf16>, vector<128x128xbf16>, vector<32x128xf32> -> vector<32x128xf32>
    %88 = vector.broadcast %13 : vector<1x128xf32> to vector<32x128xf32>
    %89 = arith.addf %87, %88 : vector<32x128xf32>
    %cst_32 = arith.constant 0.000000e+00 : f32
    %90 = vector.broadcast %cst_32 : f32 to vector<32x128xf32>
    %91 = arith.maximumf %89, %90 : vector<32x128xf32>
    %92 = vector.extract_strided_slice %91 {offsets = [0, 0], sizes = [16, 128], strides = [1, 1]} : vector<32x128xf32> to vector<16x128xf32>
    %93 = vector.broadcast %14 : vector<1x128xf32> to vector<16x128xf32>
    %94 = arith.mulf %92, %93 : vector<16x128xf32>
    %cst_33 = arith.constant dense<0.000000e+00> : vector<16xf32>
    %95 = vector.multi_reduction <add>, %94, %cst_33 [1] : vector<16x128xf32> to vector<16xf32>
    %96 = vector.shape_cast %95 : vector<16xf32> to vector<16x1xf32>
    %97 = vector.broadcast %15 : f32 to vector<16x1xf32>
    %98 = arith.addf %96, %97 : vector<16x1xf32>
    %99 = vector.extract_strided_slice %91 {offsets = [16, 0], sizes = [16, 128], strides = [1, 1]} : vector<32x128xf32> to vector<16x128xf32>
    %100 = vector.broadcast %14 : vector<1x128xf32> to vector<16x128xf32>
    %101 = arith.mulf %99, %100 : vector<16x128xf32>
    %cst_34 = arith.constant dense<0.000000e+00> : vector<16xf32>
    %102 = vector.multi_reduction <add>, %101, %cst_34 [1] : vector<16x128xf32> to vector<16xf32>
    %103 = vector.shape_cast %102 : vector<16xf32> to vector<16x1xf32>
    %104 = vector.broadcast %15 : f32 to vector<16x1xf32>
    %105 = arith.addf %103, %104 : vector<16x1xf32>
    %106 = vector.extract_strided_slice %10 {offsets = [48, 0], sizes = [16, 128], strides = [1, 1]} : vector<64x128xf32> to vector<16x128xf32>
    %107 = arith.addf %6, %106 : vector<16x128xf32>
    %108 = vector.shape_cast %107 : vector<16x128xf32> to vector<1x16x128xf32>
    %109 = vector.shape_cast %11 : vector<2x128xf32> to vector<2x1x128xf32>
    %110 = vector.broadcast %108 : vector<1x16x128xf32> to vector<2x16x128xf32>
    %111 = vector.broadcast %109 : vector<2x1x128xf32> to vector<2x16x128xf32>
    %112 = arith.addf %110, %111 : vector<2x16x128xf32>
    %cst_35 = arith.constant 0.000000e+00 : f32
    %113 = vector.broadcast %cst_35 : f32 to vector<2x16x128xf32>
    %114 = arith.maximumf %112, %113 : vector<2x16x128xf32>
    %115 = vector.shape_cast %114 : vector<2x16x128xf32> to vector<32x128xf32>
    %116 = arith.truncf %115 : vector<32x128xf32> to vector<32x128xbf16>
    %cst_36 = arith.constant dense<0.000000e+00> : vector<32x128xf32>
    %117 = tpu.matmul %116, %12, %cst_36 {dimension_numbers = #tpu.dot_dimension_numbers<[1], [0], [0], [1], [0, 0, 1, 1], [], []>} : vector<32x128xbf16>, vector<128x128xbf16>, vector<32x128xf32> -> vector<32x128xf32>
    %118 = vector.broadcast %13 : vector<1x128xf32> to vector<32x128xf32>
    %119 = arith.addf %117, %118 : vector<32x128xf32>
    %cst_37 = arith.constant 0.000000e+00 : f32
    %120 = vector.broadcast %cst_37 : f32 to vector<32x128xf32>
    %121 = arith.maximumf %119, %120 : vector<32x128xf32>
    %122 = vector.extract_strided_slice %121 {offsets = [0, 0], sizes = [16, 128], strides = [1, 1]} : vector<32x128xf32> to vector<16x128xf32>
    %123 = vector.broadcast %14 : vector<1x128xf32> to vector<16x128xf32>
    %124 = arith.mulf %122, %123 : vector<16x128xf32>
    %cst_38 = arith.constant dense<0.000000e+00> : vector<16xf32>
    %125 = vector.multi_reduction <add>, %124, %cst_38 [1] : vector<16x128xf32> to vector<16xf32>
    %126 = vector.shape_cast %125 : vector<16xf32> to vector<16x1xf32>
    %127 = vector.broadcast %15 : f32 to vector<16x1xf32>
    %128 = arith.addf %126, %127 : vector<16x1xf32>
    %129 = vector.extract_strided_slice %121 {offsets = [16, 0], sizes = [16, 128], strides = [1, 1]} : vector<32x128xf32> to vector<16x128xf32>
    %130 = vector.broadcast %14 : vector<1x128xf32> to vector<16x128xf32>
    %131 = arith.mulf %129, %130 : vector<16x128xf32>
    %cst_39 = arith.constant dense<0.000000e+00> : vector<16xf32>
    %132 = vector.multi_reduction <add>, %131, %cst_39 [1] : vector<16x128xf32> to vector<16xf32>
    %133 = vector.shape_cast %132 : vector<16xf32> to vector<16x1xf32>
    %134 = vector.broadcast %15 : f32 to vector<16x1xf32>
    %135 = arith.addf %133, %134 : vector<16x1xf32>
    %136 = tpu.concatenate %38, %45, %68, %75, %98, %105, %128, %135 in 1 : vector<16x1xf32>, vector<16x1xf32>, vector<16x1xf32>, vector<16x1xf32>, vector<16x1xf32>, vector<16x1xf32>, vector<16x1xf32>, vector<16x1xf32> -> vector<16x8xf32>
    %c0_40 = arith.constant 0 : index
    %c0_41 = arith.constant 0 : index
    %137 = vector.load %arg16[%c0_40, %c0_41] : memref<16x8xf32, #tpu.memory_space<vmem>>, vector<16x8xf32>
    tpu.vector_store %arg16[%c0_40, %c0_41], %136 {strides = array<i32>} : memref<16x8xf32, #tpu.memory_space<vmem>>, vector<16x8xf32>,
    %138 = tpu.iota {dimensions = array<i32: 1>} : vector<16x8xi32>
    %cst_42 = arith.constant dense<0xFF800000> : vector<16xf32>
    %139 = vector.multi_reduction <maximumf>, %136, %cst_42 [1] : vector<16x8xf32> to vector<16xf32>
    %140 = vector.shape_cast %139 : vector<16xf32> to vector<16x1xf32>
    %141 = vector.broadcast %140 : vector<16x1xf32> to vector<16x8xf32>
    %142 = arith.cmpf oeq, %136, %141 : vector<16x8xf32>
    %c8_i32 = arith.constant 8 : i32
    %143 = vector.broadcast %c8_i32 : i32 to vector<16x8xi32>
    %144 = arith.select %142, %138, %143 : vector<16x8xi1>, vector<16x8xi32>
    %cst_43 = arith.constant dense<2147483647> : vector<16xi32>
    %145 = vector.multi_reduction <minsi>, %144, %cst_43 [1] : vector<16x8xi32> to vector<16xi32>
    %146 = vector.shape_cast %145 : vector<16xi32> to vector<16x1xi32>
    %c0_44 = arith.constant 0 : index
    %c0_45 = arith.constant 0 : index
    %147 = vector.load %arg18[%c0_44, %c0_45] : memref<16x1xi32, #tpu.memory_space<vmem>>, vector<16x1xi32>
    tpu.vector_store %arg18[%c0_44, %c0_45], %146 {strides = array<i32>} : memref<16x1xi32, #tpu.memory_space<vmem>>, vector<16x1xi32>,
    %c0_46 = arith.constant 0 : index
    %c0_47 = arith.constant 0 : index
    %148 = vector.load %arg10[%c0_46, %c0_47] : memref<16x128xbf16, #tpu.memory_space<vmem>>, vector<16x128xbf16>
    %cst_48 = arith.constant dense<0.000000e+00> : vector<16x128xf32>
    %149 = tpu.matmul %1, %148, %cst_48 {dimension_numbers = #tpu.dot_dimension_numbers<[1], [0], [0], [1], [0, 0, 1, 1], [], []>} : vector<16x16xbf16>, vector<16x128xbf16>, vector<16x128xf32> -> vector<16x128xf32>
    %c0_49 = arith.constant 0 : index
    %c0_50 = arith.constant 0 : index
    %150 = vector.load %arg11[%c0_49, %c0_50] : memref<1x128xf32, #tpu.memory_space<vmem>>, vector<1x128xf32>
    %151 = vector.broadcast %150 : vector<1x128xf32> to vector<16x128xf32>
    %152 = arith.addf %149, %151 : vector<16x128xf32>
    %cst_51 = arith.constant 0.000000e+00 : f32
    %153 = vector.broadcast %cst_51 : f32 to vector<16x128xf32>
    %154 = arith.maximumf %152, %153 : vector<16x128xf32>
    %155 = arith.truncf %154 : vector<16x128xf32> to vector<16x128xbf16>
    %c0_52 = arith.constant 0 : index
    %c0_53 = arith.constant 0 : index
    %156 = vector.load %arg12[%c0_52, %c0_53] : memref<128x128xbf16, #tpu.memory_space<vmem>>, vector<128x128xbf16>
    %cst_54 = arith.constant dense<0.000000e+00> : vector<16x128xf32>
    %157 = tpu.matmul %155, %156, %cst_54 {dimension_numbers = #tpu.dot_dimension_numbers<[1], [0], [0], [1], [0, 0, 1, 1], [], []>} : vector<16x128xbf16>, vector<128x128xbf16>, vector<16x128xf32> -> vector<16x128xf32>
    %c0_55 = arith.constant 0 : index
    %c0_56 = arith.constant 0 : index
    %158 = vector.load %arg13[%c0_55, %c0_56] : memref<1x128xf32, #tpu.memory_space<vmem>>, vector<1x128xf32>
    %159 = vector.broadcast %158 : vector<1x128xf32> to vector<16x128xf32>
    %160 = arith.addf %157, %159 : vector<16x128xf32>
    %cst_57 = arith.constant 0.000000e+00 : f32
    %161 = vector.broadcast %cst_57 : f32 to vector<16x128xf32>
    %162 = arith.maximumf %160, %161 : vector<16x128xf32>
    %c0_58 = arith.constant 0 : index
    %c0_59 = arith.constant 0 : index
    %163 = vector.load %arg14[%c0_58, %c0_59] : memref<1x128xf32, #tpu.memory_space<vmem>>, vector<1x128xf32>
    %164 = vector.broadcast %163 : vector<1x128xf32> to vector<16x128xf32>
    %165 = arith.mulf %162, %164 : vector<16x128xf32>
    %cst_60 = arith.constant dense<0.000000e+00> : vector<16xf32>
    %166 = vector.multi_reduction <add>, %165, %cst_60 [1] : vector<16x128xf32> to vector<16xf32>
    %167 = vector.shape_cast %166 : vector<16xf32> to vector<16x1xf32>
    %c1 = arith.constant 1 : index
    %168 = memref.load %arg15[%c1] : memref<2xf32, #tpu.memory_space<smem>>
    %169 = vector.broadcast %168 : f32 to vector<16x1xf32>
    %170 = arith.addf %167, %169 : vector<16x1xf32>
    %c0_61 = arith.constant 0 : index
    %c0_62 = arith.constant 0 : index
    %171 = vector.load %arg17[%c0_61, %c0_62] : memref<16x1xf32, #tpu.memory_space<vmem>>, vector<16x1xf32>
    tpu.vector_store %arg17[%c0_61, %c0_62], %170 {strides = array<i32>} : memref<16x1xf32, #tpu.memory_space<vmem>>, vector<16x1xf32>,
    return
  }
  func.func @transform_0(%arg0: i32) -> (i32, i32) {
    %c0_i32 = arith.constant 0 : i32
    %c0_i32_0 = arith.constant 0 : i32
    return %arg0, %c0_i32 : i32, i32
  }
  func.func @transform_1(%arg0: i32) -> (i32, i32, i32) {
    %c0_i32 = arith.constant 0 : i32
    %c0_i32_0 = arith.constant 0 : i32
    %c0_i32_1 = arith.constant 0 : i32
    return %c0_i32, %arg0, %c0_i32_0 : i32, i32, i32
  }
  func.func @transform_2(%arg0: i32) -> (i32, i32) {
    %c0_i32 = arith.constant 0 : i32
    %c0_i32_0 = arith.constant 0 : i32
    %c0_i32_1 = arith.constant 0 : i32
    return %c0_i32, %c0_i32_0 : i32, i32
  }
  func.func @transform_3(%arg0: i32) -> (i32, i32) {
    %c0_i32 = arith.constant 0 : i32
    %c0_i32_0 = arith.constant 0 : i32
    %c0_i32_1 = arith.constant 0 : i32
    return %c0_i32, %c0_i32_0 : i32, i32
  }
  func.func @transform_4(%arg0: i32) -> (i32, i32) {
    %c0_i32 = arith.constant 0 : i32
    %c0_i32_0 = arith.constant 0 : i32
    %c0_i32_1 = arith.constant 0 : i32
    return %c0_i32, %c0_i32_0 : i32, i32
  }
  func.func @transform_5(%arg0: i32) -> (i32, i32) {
    %c0_i32 = arith.constant 0 : i32
    %c0_i32_0 = arith.constant 0 : i32
    %c0_i32_1 = arith.constant 0 : i32
    return %c0_i32, %c0_i32_0 : i32, i32
  }
  func.func @transform_6(%arg0: i32) -> (i32, i32) {
    %c0_i32 = arith.constant 0 : i32
    %c0_i32_0 = arith.constant 0 : i32
    %c0_i32_1 = arith.constant 0 : i32
    return %c0_i32, %c0_i32_0 : i32, i32
  }
  func.func @transform_7(%arg0: i32) -> (i32, i32) {
    %c0_i32 = arith.constant 0 : i32
    %c0_i32_0 = arith.constant 0 : i32
    %c0_i32_1 = arith.constant 0 : i32
    return %c0_i32, %c0_i32_0 : i32, i32
  }
  func.func @transform_8(%arg0: i32) -> (i32, i32) {
    %c0_i32 = arith.constant 0 : i32
    %c0_i32_0 = arith.constant 0 : i32
    %c0_i32_1 = arith.constant 0 : i32
    return %c0_i32, %c0_i32_0 : i32, i32
  }
  func.func @transform_9(%arg0: i32) -> (i32, i32) {
    %c0_i32 = arith.constant 0 : i32
    %c0_i32_0 = arith.constant 0 : i32
    %c0_i32_1 = arith.constant 0 : i32
    return %c0_i32, %c0_i32_0 : i32, i32
  }
  func.func @transform_10(%arg0: i32) -> (i32, i32) {
    %c0_i32 = arith.constant 0 : i32
    %c0_i32_0 = arith.constant 0 : i32
    %c0_i32_1 = arith.constant 0 : i32
    return %c0_i32, %c0_i32_0 : i32, i32
  }
  func.func @transform_11(%arg0: i32) -> (i32, i32) {
    %c0_i32 = arith.constant 0 : i32
    %c0_i32_0 = arith.constant 0 : i32
    %c0_i32_1 = arith.constant 0 : i32
    return %c0_i32, %c0_i32_0 : i32, i32
  }
  func.func @transform_12(%arg0: i32) -> (i32, i32) {
    %c0_i32 = arith.constant 0 : i32
    %c0_i32_0 = arith.constant 0 : i32
    %c0_i32_1 = arith.constant 0 : i32
    return %c0_i32, %c0_i32_0 : i32, i32
  }
  func.func @transform_13(%arg0: i32) -> (i32, i32) {
    %c0_i32 = arith.constant 0 : i32
    %c0_i32_0 = arith.constant 0 : i32
    %c0_i32_1 = arith.constant 0 : i32
    return %c0_i32, %c0_i32_0 : i32, i32
  }
  func.func @transform_14(%arg0: i32) -> i32 {
    %c0_i32 = arith.constant 0 : i32
    %c0_i32_0 = arith.constant 0 : i32
    return %c0_i32 : i32
  }
  func.func @transform_15(%arg0: i32) -> (i32, i32) {
    %c0_i32 = arith.constant 0 : i32
    %c0_i32_0 = arith.constant 0 : i32
    return %arg0, %c0_i32 : i32, i32
  }
  func.func @transform_16(%arg0: i32) -> (i32, i32) {
    %c0_i32 = arith.constant 0 : i32
    %c0_i32_0 = arith.constant 0 : i32
    return %arg0, %c0_i32 : i32, i32
  }
  func.func @transform_17(%arg0: i32) -> (i32, i32) {
    %c0_i32 = arith.constant 0 : i32
    %c0_i32_0 = arith.constant 0 : i32
    return %arg0, %c0_i32 : i32, i32
  }
}

</mosaic_0001>

<llo_original>
// kernel: squeeze.3
$region0: #{squeeze.3}
  %s0 = inlined_call_operand.vmem [shape: s32[4], index: 0, kind: input, shape index: {}]
  %s1 = inlined_call_operand.hbm [shape: s32[2,2], index: 1, kind: output, shape index: {}]
  $region1: #{squeeze.3} parent=0
    #allocation0 [shape = 'u8[1024]{0}', space=vmem, size = 0x400, scoped, tag = 'operand span for operand 1']
    #allocation1 [shape = 's32[1]{0}', space=sflag, size = 0x4, scoped, tag = 'scoped memory for squeeze.3']
    #allocation2 [shape = 'u8[4096]{0}', space=vmem, size = 0x1000, scoped, tag = 'scoped mem for output reshape']
    #allocation3 [shape = 'u8[4096]{0}', space=vmem, size = 0x1000, scoped, tag = 'scoped mem for input reshape']
    %2 = vsyncpa [#allocation1], 0
    %s4 = sshll.u32 1, 1
    %s5 = ssub.s32 %s4, 1
    %v6 = vld [vmem:[%s0] sm:%s5]
    %7 = vst [vmem:[#allocation3] sm:%s5] %v6
    %v8 = vld [vmem:[#allocation3] sm:$0x1]
    %vm9 = vcmask 15360
    %10 = vst.msk [vmem:[#allocation2] sm:$0x1] %vm9, %v8
    %v11 = vld [vmem:[#allocation3] sm:$0x1]
    %12 = vrot.lane.b32.xlu0 %v11, 126
    %v13 = vpop.permute.xlu0 %12
    %vm14 = vcmask 15360
    %s15 = scalar_lea.vmem [#allocation2], 1
    %16 = vst.msk [vmem:[%s15] sm:$0x1] %vm14, %v13
    %s18 = sshll.u32 1, 2
    %s19 = ssub.s32 %s18, 1
    %v21 = vld [vmem:[#allocation2] sm:%s19]
    %s22 = sshll.u32 1, 2
    %s23 = ssub.s32 %s22, 1
    %24 = vst [vmem:[#allocation0] sm:%s23] %v21
    %s26 = ssub.s32 32, 32
    %27 = vsyncadd [#allocation1], %s26
    %s29 = sshll.u32 [#allocation0], 4
    %s30 = int_to_ptr.vmem [resolvable:$true] %s29
    %32 = dma.vmem_to_hbm [thread:$0]  %s30, 32, %s1, [#allocation1]
    %33 = dma.done [#allocation1], 32
    %34 = vsyncpa [#allocation1], 1

// kernel: squeeze.2
$region0: #{squeeze.2}
  %s0 = inlined_call_operand.vmem [shape: f32[4], index: 0, kind: input, shape index: {}]
  %s1 = inlined_call_operand.hbm [shape: f32[2,2], index: 1, kind: output, shape index: {}]
  $region1: #{squeeze.2} parent=0
    #allocation0 [shape = 'u8[1024]{0}', space=vmem, size = 0x400, scoped, tag = 'operand span for operand 1']
    #allocation1 [shape = 's32[1]{0}', space=sflag, size = 0x4, scoped, tag = 'scoped memory for squeeze.2']
    #allocation2 [shape = 'u8[4096]{0}', space=vmem, size = 0x1000, scoped, tag = 'scoped mem for output reshape']
    #allocation3 [shape = 'u8[4096]{0}', space=vmem, size = 0x1000, scoped, tag = 'scoped mem for input reshape']
    %2 = vsyncpa [#allocation1], 0
    %s4 = sshll.u32 1, 1
    %s5 = ssub.s32 %s4, 1
    %v6 = vld [vmem:[%s0] sm:%s5]
    %7 = vst [vmem:[#allocation3] sm:%s5] %v6
    %v8 = vld [vmem:[#allocation3] sm:$0x1]
    %vm9 = vcmask 15360
    %10 = vst.msk [vmem:[#allocation2] sm:$0x1] %vm9, %v8
    %v11 = vld [vmem:[#allocation3] sm:$0x1]
    %12 = vrot.lane.b32.xlu0 %v11, 126
    %v13 = vpop.permute.xlu0 %12
    %vm14 = vcmask 15360
    %s15 = scalar_lea.vmem [#allocation2], 1
    %16 = vst.msk [vmem:[%s15] sm:$0x1] %vm14, %v13
    %s18 = sshll.u32 1, 2
    %s19 = ssub.s32 %s18, 1
    %v21 = vld [vmem:[#allocation2] sm:%s19]
    %s22 = sshll.u32 1, 2
    %s23 = ssub.s32 %s22, 1
    %24 = vst [vmem:[#allocation0] sm:%s23] %v21
    %s26 = ssub.s32 32, 32
    %27 = vsyncadd [#allocation1], %s26
    %s29 = sshll.u32 [#allocation0], 4
    %s30 = int_to_ptr.vmem [resolvable:$true] %s29
    %32 = dma.vmem_to_hbm [thread:$0]  %s30, 32, %s1, [#allocation1]
    %33 = dma.done [#allocation1], 32
    %34 = vsyncpa [#allocation1], 1

// kernel: low_level_net_forward.1
$region0: #{low_level_net_forward.1}
  #allocation0 [shape = 'u32[]', space=smem, size = 0x4, offset = 0x4, fixed_abs, tag = 'smem constant byte address 0x4 - core index']
  #allocation1 [shape = 'u32[144,128]{1,0:T(1,128)}', space=vmem, size = 0x12000, scoped, tag = 'internal scratch']
  %s0 = inlined_call_operand.vmem [shape: f32[16,16], index: 0, kind: input, shape index: {}]
  %s1 = inlined_call_operand.vmem [shape: bf16[4,16,8], index: 1, kind: input, shape index: {}]
  %s2 = inlined_call_operand.vmem [shape: bf16[16,128], index: 2, kind: input, shape index: {}]
  %s3 = inlined_call_operand.vmem [shape: bf16[8,128], index: 3, kind: input, shape index: {}]
  %s4 = inlined_call_operand.vmem [shape: f32[2,128], index: 4, kind: input, shape index: {}]
  %s5 = inlined_call_operand.vmem [shape: f32[1,128], index: 5, kind: input, shape index: {}]
  %s6 = inlined_call_operand.vmem [shape: bf16[128,128], index: 6, kind: input, shape index: {}]
  %s7 = inlined_call_operand.vmem [shape: f32[1,128], index: 7, kind: input, shape index: {}]
  %s8 = inlined_call_operand.vmem [shape: f32[1,128], index: 8, kind: input, shape index: {}]
  %s9 = inlined_call_operand.vmem [shape: bf16[16,128], index: 9, kind: input, shape index: {}]
  %s10 = inlined_call_operand.vmem [shape: f32[1,128], index: 10, kind: input, shape index: {}]
  %s11 = inlined_call_operand.vmem [shape: bf16[128,128], index: 11, kind: input, shape index: {}]
  %s12 = inlined_call_operand.vmem [shape: f32[1,128], index: 12, kind: input, shape index: {}]
  %s13 = inlined_call_operand.vmem [shape: f32[1,128], index: 13, kind: input, shape index: {}]
  %s14 = inlined_call_operand.vmem [shape: f32[2], index: 14, kind: input, shape index: {}]
  %s15 = inlined_call_operand.vmem [shape: f32[16,8], index: 15, kind: output, shape index: {0}]
  %s16 = inlined_call_operand.vmem [shape: f32[16,1], index: 16, kind: output, shape index: {1}]
  %s17 = inlined_call_operand.vmem [shape: s32[16,1], index: 17, kind: output, shape index: {2}]
  %18 = xla_tuple %s15, %s16, %s17
  %s19 = sld [smem:[#allocation0]]
  $region90: #{low_level_net_forward.1} parent=0
    _
  %s21 = ssub.s32 1, %s19
  %s22 = scalar_select 0, %s21, %s19
  $region1: #{low_level_net_forward.1} parent=0
    #allocation2 [shape = 'u8[512]{0}', space=smem, size = 0x200, scoped, tag = 'input window, operand 14, single buffered']
    #allocation3 [shape = 's32[1]{0}', space=sflag, size = 0x4, scoped, tag = 'scoped memory for low_level_net_forward.1']
    %23 = vsyncpa [#allocation3], 0
    // Predicated region
    $region2: #{low_level_net_forward.1} parent=1 // pred_check
      _
    $region3: #{low_level_net_forward.1} parent=1 // pred_check_branch
      %25 = sbr.rel (0) target = $region5
    $region4: #{low_level_net_forward.1} parent=1 // pred_region
      _
    $region5: #{low_level_net_forward.1} parent=1 // pred_fallthru
      _
    // Predicated region
    $region6: #{low_level_net_forward.1} parent=1 // pred_check
      _
    $region7: #{low_level_net_forward.1} parent=1 // pred_check_branch
      %27 = sbr.rel (0) target = $region9
    $region8: #{low_level_net_forward.1} parent=1 // pred_region
      _
    $region9: #{low_level_net_forward.1} parent=1 // pred_fallthru
      _
    // Predicated region
    $region10: #{low_level_net_forward.1} parent=1 // pred_check
      _
    $region11: #{low_level_net_forward.1} parent=1 // pred_check_branch
      %29 = sbr.rel (0) target = $region13
    $region12: #{low_level_net_forward.1} parent=1 // pred_region
      _
    $region13: #{low_level_net_forward.1} parent=1 // pred_fallthru
      _
    // Predicated region
    $region14: #{low_level_net_forward.1} parent=1 // pred_check
      _
    $region15: #{low_level_net_forward.1} parent=1 // pred_check_branch
      %31 = sbr.rel (0) target = $region17
    $region16: #{low_level_net_forward.1} parent=1 // pred_region
      _
    $region17: #{low_level_net_forward.1} parent=1 // pred_fallthru
      _
    // Predicated region
    $region18: #{low_level_net_forward.1} parent=1 // pred_check
      _
    $region19: #{low_level_net_forward.1} parent=1 // pred_check_branch
      %33 = sbr.rel (0) target = $region21
    $region20: #{low_level_net_forward.1} parent=1 // pred_region
      _
    $region21: #{low_level_net_forward.1} parent=1 // pred_fallthru
      _
    // Predicated region
    $region22: #{low_level_net_forward.1} parent=1 // pred_check
      _
    $region23: #{low_level_net_forward.1} parent=1 // pred_check_branch
      %35 = sbr.rel (0) target = $region25
    $region24: #{low_level_net_forward.1} parent=1 // pred_region
      _
    $region25: #{low_level_net_forward.1} parent=1 // pred_fallthru
      _
    // Predicated region
    $region26: #{low_level_net_forward.1} parent=1 // pred_check
      _
    $region27: #{low_level_net_forward.1} parent=1 // pred_check_branch
      %37 = sbr.rel (0) target = $region29
    $region28: #{low_level_net_forward.1} parent=1 // pred_region
      _
    $region29: #{low_level_net_forward.1} parent=1 // pred_fallthru
      _
    // Predicated region
    $region30: #{low_level_net_forward.1} parent=1 // pred_check
      _
    $region31: #{low_level_net_forward.1} parent=1 // pred_check_branch
      %39 = sbr.rel (0) target = $region33
    $region32: #{low_level_net_forward.1} parent=1 // pred_region
      _
    $region33: #{low_level_net_forward.1} parent=1 // pred_fallthru
      _
    // Predicated region
    $region34: #{low_level_net_forward.1} parent=1 // pred_check
      _
    $region35: #{low_level_net_forward.1} parent=1 // pred_check_branch
      %41 = sbr.rel (0) target = $region37
    $region36: #{low_level_net_forward.1} parent=1 // pred_region
      _
    $region37: #{low_level_net_forward.1} parent=1 // pred_fallthru
      _
    // Predicated region
    $region38: #{low_level_net_forward.1} parent=1 // pred_check
      _
    $region39: #{low_level_net_forward.1} parent=1 // pred_check_branch
      %43 = sbr.rel (0) target = $region41
    $region40: #{low_level_net_forward.1} parent=1 // pred_region
      _
    $region41: #{low_level_net_forward.1} parent=1 // pred_fallthru
      _
    // Predicated region
    $region42: #{low_level_net_forward.1} parent=1 // pred_check
      _
    $region43: #{low_level_net_forward.1} parent=1 // pred_check_branch
      %45 = sbr.rel (0) target = $region45
    $region44: #{low_level_net_forward.1} parent=1 // pred_region
      _
    $region45: #{low_level_net_forward.1} parent=1 // pred_fallthru
      _
    // Predicated region
    $region46: #{low_level_net_forward.1} parent=1 // pred_check
      _
    $region47: #{low_level_net_forward.1} parent=1 // pred_check_branch
      %47 = sbr.rel (0) target = $region49
    $region48: #{low_level_net_forward.1} parent=1 // pred_region
      _
    $region49: #{low_level_net_forward.1} parent=1 // pred_fallthru
      _
    // Predicated region
    $region50: #{low_level_net_forward.1} parent=1 // pred_check
      _
    $region51: #{low_level_net_forward.1} parent=1 // pred_check_branch
      %49 = sbr.rel (0) target = $region53
    $region52: #{low_level_net_forward.1} parent=1 // pred_region
      _
    $region53: #{low_level_net_forward.1} parent=1 // pred_fallthru
      _
    // Predicated region
    $region54: #{low_level_net_forward.1} parent=1 // pred_check
      _
    $region55: #{low_level_net_forward.1} parent=1 // pred_check_branch
      %51 = sbr.rel (0) target = $region57
    $region56: #{low_level_net_forward.1} parent=1 // pred_region
      _
    $region57: #{low_level_net_forward.1} parent=1 // pred_fallthru
      _
    // Predicated region
    $region58: #{low_level_net_forward.1} parent=1 // pred_check
      _
    $region59: #{low_level_net_forward.1} parent=1 // pred_check_branch
      %53 = sbr.rel (0) target = $region61
    $region60: #{low_level_net_forward.1} parent=1 // pred_region
      %s55 = ssub.s32 16, 16
      %56 = vsyncadd [#allocation3], %s55
      %s58 = sshll.u32 %s14, 4
      %s59 = int_to_ptr.vmem [resolvable:$true] %s58
      %61 = dma.vmem_to_smem %s59, 16, [#allocation2], [#allocation3]
    $region61: #{low_level_net_forward.1} parent=1 // pred_fallthru
      _
    // Predicated region
    $region62: #{low_level_net_forward.1} parent=1 // pred_check
      _
    $region63: #{low_level_net_forward.1} parent=1 // pred_check_branch
      %63 = sbr.rel (0) target = $region65
    $region64: #{low_level_net_forward.1} parent=1 // pred_region
      %64 = dma.done [#allocation3], 16
    $region65: #{low_level_net_forward.1} parent=1 // pred_fallthru
      _
    %65 = sfence
    %v67 = vld [vmem:[%s0] sm:$0xff]
    %v68 = vld [vmem:[%s0 + $0x8] sm:$0xff]
    %v69 = vpack.c.bf16 %v68, %v67
    %v70 = vld [vmem:[%s2] sm:$0xf]
    %v71 = vld [vmem:[%s2 + $0x4] sm:$0xf]
    %v72 = vld [vmem:[%s5] sm:$0x1]
    %v74 = vlaneseq
    %v75 = vshrl.u32 %v74, 7
    %v76 = vsub.s32 0, %v75
    %v77 = vrot.slane %v72, %v76
    %v81 = vunpack.c.l.b16 %v70
    %v82 = vunpack.c.l.b16 %v71
    %v83 = vpack.c.b16 %v82, %v81
    %vm85 = vcmask 130048
    %v87 = vsel %vm85, %v69, 0
    %89 = vmatprep.subr.bf16.mxu0 0
    %90 = vmatpush1.bf16.msra.mxu0 0
    %91 = vmatprep.subr.bf16.mxu0 0
    %92 = vmatpush1.bf16.msra.mxu0 0
    %93 = vmatprep.subr.bf16.mxu0 0
    %94 = vmatpush1.bf16.msra.mxu0 0
    %95 = vmatprep.subr.bf16.mxu0 0
    %96 = vmatpush1.bf16.msra.mxu0 0
    %97 = vmatprep.subr.bf16.mxu0 0
    %98 = vmatpush1.bf16.msra.mxu0 0
    %99 = vmatprep.subr.bf16.mxu0 0
    %100 = vmatpush1.bf16.msra.mxu0 0
    %101 = vmatprep.subr.bf16.mxu0 0
    %102 = vmatpush1.bf16.msra.mxu0 0
    %103 = vmatprep.subr.bf16.mxu0 0
    %104 = vmatpush1.bf16.msra.mxu0 %v83
    %105 = vmatprep.subr.bf16.mxu0 0
    %106 = vmatpush2.bf16.msra.mxu0 0
    %107 = vmatprep.subr.bf16.mxu0 0
    %108 = vmatpush2.bf16.msra.mxu0 0
    %109 = vmatprep.subr.bf16.mxu0 0
    %110 = vmatpush2.bf16.msra.mxu0 0
    %111 = vmatprep.subr.bf16.mxu0 0
    %112 = vmatpush2.bf16.msra.mxu0 0
    %113 = vmatprep.subr.bf16.mxu0 0
    %114 = vmatpush2.bf16.msra.mxu0 0
    %115 = vmatprep.subr.bf16.mxu0 0
    %116 = vmatpush2.bf16.msra.mxu0 0
    %117 = vmatprep.subr.bf16.mxu0 0
    %118 = vmatpush2.bf16.msra.mxu0 0
    %119 = vmatprep.subr.bf16.mxu0 0
    %120 = vmatpush2.bf16.msra.mxu0 0
    %121 = vmatprep.mubr.bf16.mxu0 0
    %122 = vmatmul.mubr.bf16.gmra.mxu0 %v87
    %v123 = vpop.f32.mrf.mxu0
    %v124 = vadd.f32 %v77, %v123
    %v125 = vpop.f32.mrf.mxu0
    %v126 = vpop.f32.mrf.mxu0
    %v127 = vadd.f32 %v77, %v126
    %v128 = vpop.f32.mrf.mxu0
    %129 = vdwg.mxu0
    %v130 = vld [vmem:[%s1] sm:$0xf]
    %v131 = vld [vmem:[%s1 + $0x4] sm:$0xf]
    %v132 = vld [vmem:[%s1 + $0x8] sm:$0xf]
    %v133 = vld [vmem:[%s1 + $0xc] sm:$0xf]
    %v134 = vld [vmem:[%s1 + $0x10] sm:$0xf]
    %v135 = vld [vmem:[%s1 + $0x14] sm:$0xf]
    %v136 = vld [vmem:[%s1 + $0x18] sm:$0xf]
    %v137 = vld [vmem:[%s1 + $0x1c] sm:$0xf]
    %v138 = vld [vmem:[%s3] sm:$0xf]
    %v147 = vunpack.c.l.b16 %v130
    %v148 = vunpack.c.l.b16 %v131
    %v149 = vunpack.c.l.b16 %v132
    %v150 = vunpack.c.l.b16 %v133
    %v151 = vunpack.c.l.b16 %v134
    %v152 = vunpack.c.l.b16 %v135
    %v153 = vunpack.c.l.b16 %v136
    %v154 = vunpack.c.l.b16 %v137
    %v155 = vpack.c.b16 %v148, %v147
    %v156 = vpack.c.b16 %v150, %v149
    %v157 = vpack.c.b16 %v152, %v151
    %v158 = vpack.c.b16 %v154, %v153
    %vm159 = vcmask 64512
    %v161 = vsel %vm159, %v155, 0
    %v164 = vsel %vm159, %v156, 0
    %v167 = vsel %vm159, %v157, 0
    %v170 = vsel %vm159, %v158, 0
    %vm172 = vcmask 1043456
    %v174 = vsel %vm172, %v138, 0
    %176 = vmatprep.subr.bf16.mxu0 0
    %177 = vmatpush1.bf16.msra.mxu0 0
    %178 = vmatprep.subr.bf16.mxu0 0
    %179 = vmatpush1.bf16.msra.mxu0 0
    %180 = vmatprep.subr.bf16.mxu0 0
    %181 = vmatpush1.bf16.msra.mxu0 0
    %182 = vmatprep.subr.bf16.mxu0 0
    %183 = vmatpush1.bf16.msra.mxu0 0
    %184 = vmatprep.subr.bf16.mxu0 0
    %185 = vmatpush1.bf16.msra.mxu0 0
    %186 = vmatprep.subr.bf16.mxu0 0
    %187 = vmatpush1.bf16.msra.mxu0 0
    %188 = vmatprep.subr.bf16.mxu0 0
    %189 = vmatpush1.bf16.msra.mxu0 0
    %190 = vmatprep.subr.bf16.mxu0 0
    %191 = vmatpush1.bf16.msra.mxu0 %v174
    %192 = vmatprep.subr.bf16.mxu0 0
    %193 = vmatpush2.bf16.msra.mxu0 0
    %194 = vmatprep.subr.bf16.mxu0 0
    %195 = vmatpush2.bf16.msra.mxu0 0
    %196 = vmatprep.subr.bf16.mxu0 0
    %197 = vmatpush2.bf16.msra.mxu0 0
    %198 = vmatprep.subr.bf16.mxu0 0
    %199 = vmatpush2.bf16.msra.mxu0 0
    %200 = vmatprep.subr.bf16.mxu0 0
    %201 = vmatpush2.bf16.msra.mxu0 0
    %202 = vmatprep.subr.bf16.mxu0 0
    %203 = vmatpush2.bf16.msra.mxu0 0
    %204 = vmatprep.subr.bf16.mxu0 0
    %205 = vmatpush2.bf16.msra.mxu0 0
    %206 = vmatprep.subr.bf16.mxu0 0
    %207 = vmatpush2.bf16.msra.mxu0 0
    %208 = vmatprep.mubr.bf16.mxu0 0
    %209 = vmatmul.mubr.bf16.gmra.mxu0 %v161
    %v210 = vpop.f32.mrf.mxu0
    %v211 = vadd.f32 0.0, %v210
    %v212 = vpop.f32.mrf.mxu0
    %v213 = vpop.f32.mrf.mxu0
    %v214 = vadd.f32 0.0, %v213
    %v215 = vpop.f32.mrf.mxu0
    %216 = vmatprep.mubr.bf16.mxu0 0
    %217 = vmatmul.mubr.bf16.gmra.mxu0 %v164
    %v218 = vpop.f32.mrf.mxu0
    %v219 = vadd.f32 0.0, %v218
    %v220 = vpop.f32.mrf.mxu0
    %v221 = vpop.f32.mrf.mxu0
    %v222 = vadd.f32 0.0, %v221
    %v223 = vpop.f32.mrf.mxu0
    %224 = vmatprep.mubr.bf16.mxu0 0
    %225 = vmatmul.mubr.bf16.gmra.mxu0 %v167
    %v226 = vpop.f32.mrf.mxu0
    %v227 = vadd.f32 0.0, %v226
    %v228 = vpop.f32.mrf.mxu0
    %v229 = vpop.f32.mrf.mxu0
    %v230 = vadd.f32 0.0, %v229
    %v231 = vpop.f32.mrf.mxu0
    %232 = vmatprep.mubr.bf16.mxu0 0
    %233 = vmatmul.mubr.bf16.gmra.mxu0 %v170
    %v234 = vpop.f32.mrf.mxu0
    %v235 = vadd.f32 0.0, %v234
    %v236 = vpop.f32.mrf.mxu0
    %v237 = vpop.f32.mrf.mxu0
    %v238 = vadd.f32 0.0, %v237
    %v239 = vpop.f32.mrf.mxu0
    %240 = vdwg.mxu0
    %v241 = vld [vmem:[%s4] sm:$0x3]
    %v242 = vld [vmem:[%s6] sm:$0xf]
    %v243 = vld [vmem:[%s6 + $0x4] sm:$0xf]
    %v244 = vld [vmem:[%s6 + $0x8] sm:$0xf]
    %v245 = vld [vmem:[%s6 + $0xc] sm:$0xf]
    %v246 = vld [vmem:[%s6 + $0x10] sm:$0xf]
    %v247 = vld [vmem:[%s6 + $0x14] sm:$0xf]
    %v248 = vld [vmem:[%s6 + $0x18] sm:$0xf]
    %v249 = vld [vmem:[%s6 + $0x1c] sm:$0xf]
    %v250 = vld [vmem:[%s6 + $0x20] sm:$0xf]
    %v251 = vld [vmem:[%s6 + $0x24] sm:$0xf]
    %v252 = vld [vmem:[%s6 + $0x28] sm:$0xf]
    %v253 = vld [vmem:[%s6 + $0x2c] sm:$0xf]
    %v254 = vld [vmem:[%s6 + $0x30] sm:$0xf]
    %v255 = vld [vmem:[%s6 + $0x34] sm:$0xf]
    %v256 = vld [vmem:[%s6 + $0x38] sm:$0xf]
    %v257 = vld [vmem:[%s6 + $0x3c] sm:$0xf]
    %v258 = vld [vmem:[%s7] sm:$0x1]
    %v259 = vld [vmem:[%s8] sm:$0x1]
    %s260 = sld [smem:[#allocation2]]
    %v261 = vadd.f32 %v124, %v211
    %v262 = vadd.f32 %v127, %v214
    %v265 = vunpack.c.l.s4 1966171168
    %v266 = vunpack.c.0.s8 %v265
    %v267 = vlaneseq
    %v268 = vshrl.u32 %v267, 7
    %v269 = vsub.s32 %v266, %v268
    %v270 = vrot.slane %v241, %v269
    %v271 = vcombine.high %v270, %v270
    %v273 = vunpack.c.l.s4 1966171168
    %v274 = vunpack.c.0.s8 %v273
    %v275 = vlaneseq
    %v276 = vshrl.u32 %v275, 7
    %v277 = vsub.s32 %v274, %v276
    %v278 = vrot.slane %v270, %v277
    %v280 = vunpack.c.l.s4 1966171168
    %v281 = vunpack.c.0.s8 %v280
    %v282 = vlaneseq
    %v283 = vshrl.u32 %v282, 7
    %v284 = vsub.s32 %v281, %v283
    %v285 = vrot.slane %v271, %v284
    %v286 = vlaneseq
    %v287 = vshrl.u32 %v286, 7
    %v288 = vsub.s32 0, %v287
    %v289 = vrot.slane %v278, %v288
    %v290 = vlaneseq
    %v291 = vshrl.u32 %v290, 7
    %v292 = vsub.s32 0, %v291
    %v293 = vrot.slane %v285, %v292
    %v296 = vadd.f32 %v261, %v289
    %v297 = vadd.f32 %v262, %v289
    %v298 = vadd.f32 %v261, %v293
    %v299 = vadd.f32 %v262, %v293
    %v300 = vmax.f32 %v296, 0.0
    %v301 = vmax.f32 %v297, 0.0
    %v302 = vmax.f32 %v298, 0.0
    %v303 = vmax.f32 %v299, 0.0
    %v304 = vpack.c.bf16 %v301, %v300
    %v305 = vpack.c.bf16 %v303, %v302
    %v307 = vlaneseq
    %v308 = vshrl.u32 %v307, 7
    %v309 = vsub.s32 0, %v308
    %v310 = vrot.slane %v258, %v309
    %v328 = vunpack.c.l.b16 %v242
    %v329 = vunpack.c.l.b16 %v243
    %v330 = vunpack.c.l.b16 %v244
    %v331 = vunpack.c.l.b16 %v245
    %v332 = vunpack.c.l.b16 %v246
    %v333 = vunpack.c.l.b16 %v247
    %v334 = vunpack.c.l.b16 %v248
    %v335 = vunpack.c.l.b16 %v249
    %v336 = vunpack.c.l.b16 %v250
    %v337 = vunpack.c.l.b16 %v251
    %v338 = vunpack.c.l.b16 %v252
    %v339 = vunpack.c.l.b16 %v253
    %v340 = vunpack.c.l.b16 %v254
    %v341 = vunpack.c.l.b16 %v255
    %v342 = vunpack.c.l.b16 %v256
    %v343 = vunpack.c.l.b16 %v257
    %v344 = vpack.c.b16 %v329, %v328
    %v345 = vpack.c.b16 %v331, %v330
    %v346 = vpack.c.b16 %v333, %v332
    %v347 = vpack.c.b16 %v335, %v334
    %v348 = vpack.c.b16 %v337, %v336
    %v349 = vpack.c.b16 %v339, %v338
    %v350 = vpack.c.b16 %v341, %v340
    %v351 = vpack.c.b16 %v343, %v342
    %360 = vmatprep.subr.bf16.mxu0 0
    %361 = vmatpush1.bf16.msra.mxu0 %v351
    %362 = vmatprep.subr.bf16.mxu0 0
    %363 = vmatpush1.bf16.msra.mxu0 %v350
    %364 = vmatprep.subr.bf16.mxu0 0
    %365 = vmatpush1.bf16.msra.mxu0 %v349
    %366 = vmatprep.subr.bf16.mxu0 0
    %367 = vmatpush1.bf16.msra.mxu0 %v348
    %368 = vmatprep.subr.bf16.mxu0 0
    %369 = vmatpush1.bf16.msra.mxu0 %v347
    %370 = vmatprep.subr.bf16.mxu0 0
    %371 = vmatpush1.bf16.msra.mxu0 %v346
    %372 = vmatprep.subr.bf16.mxu0 0
    %373 = vmatpush1.bf16.msra.mxu0 %v345
    %374 = vmatprep.subr.bf16.mxu0 0
    %375 = vmatpush1.bf16.msra.mxu0 %v344
    %376 = vmatprep.subr.bf16.mxu0 0
    %377 = vmatpush2.bf16.msra.mxu0 0
    %378 = vmatprep.subr.bf16.mxu0 0
    %379 = vmatpush2.bf16.msra.mxu0 0
    %380 = vmatprep.subr.bf16.mxu0 0
    %381 = vmatpush2.bf16.msra.mxu0 0
    %382 = vmatprep.subr.bf16.mxu0 0
    %383 = vmatpush2.bf16.msra.mxu0 0
    %384 = vmatprep.subr.bf16.mxu0 0
    %385 = vmatpush2.bf16.msra.mxu0 0
    %386 = vmatprep.subr.bf16.mxu0 0
    %387 = vmatpush2.bf16.msra.mxu0 0
    %388 = vmatprep.subr.bf16.mxu0 0
    %389 = vmatpush2.bf16.msra.mxu0 0
    %390 = vmatprep.subr.bf16.mxu0 0
    %391 = vmatpush2.bf16.msra.mxu0 0
    %392 = vmatprep.mubr.bf16.mxu0 0
    %393 = vmatmul.mubr.bf16.gmra.mxu0 %v304
    %v394 = vpop.f32.mrf.mxu0
    %v395 = vadd.f32 %v310, %v394
    %v396 = vpop.f32.mrf.mxu0
    %v397 = vpop.f32.mrf.mxu0
    %v398 = vadd.f32 %v310, %v397
    %v399 = vpop.f32.mrf.mxu0
    %400 = vmatprep.mubr.bf16.mxu0 0
    %401 = vmatmul.mubr.bf16.gmra.mxu0 %v305
    %v402 = vpop.f32.mrf.mxu0
    %v403 = vadd.f32 %v310, %v402
    %v404 = vpop.f32.mrf.mxu0
    %v405 = vpop.f32.mrf.mxu0
    %v406 = vadd.f32 %v310, %v405
    %v407 = vpop.f32.mrf.mxu0
    %408 = vdwg.mxu0
    %v409 = vmax.f32 %v395, 0.0
    %v410 = vmax.f32 %v398, 0.0
    %v411 = vmax.f32 %v403, 0.0
    %v412 = vmax.f32 %v406, 0.0
    %v414 = vlaneseq
    %v415 = vshrl.u32 %v414, 7
    %v416 = vsub.s32 0, %v415
    %v417 = vrot.slane %v259, %v416
    %v419 = vmul.f32 %v409, %v417
    %v420 = vmul.f32 %v410, %v417
    %421 = vadd.xlane.f32.xlu0 %v419
    %v422 = vpop.xlane.xlu0 %421
    %423 = vadd.xlane.f32.xlu0 %v420
    %v424 = vpop.xlane.xlu0 %423
    %v425 = vstv %s260
    %v426 = vadd.f32 %v422, %v425
    %v427 = vadd.f32 %v424, %v425
    %v428 = vmul.f32 %v411, %v417
    %v429 = vmul.f32 %v412, %v417
    %430 = vadd.xlane.f32.xlu0 %v428
    %v431 = vpop.xlane.xlu0 %430
    %432 = vadd.xlane.f32.xlu0 %v429
    %v433 = vpop.xlane.xlu0 %432
    %v434 = vadd.f32 %v431, %v425
    %v435 = vadd.f32 %v433, %v425
    %v436 = vadd.f32 %v124, %v219
    %v437 = vadd.f32 %v127, %v222
    %v438 = vadd.f32 %v436, %v289
    %v439 = vadd.f32 %v437, %v289
    %v440 = vadd.f32 %v436, %v293
    %v441 = vadd.f32 %v437, %v293
    %v442 = vmax.f32 %v438, 0.0
    %v443 = vmax.f32 %v439, 0.0
    %v444 = vmax.f32 %v440, 0.0
    %v445 = vmax.f32 %v441, 0.0
    %v446 = vpack.c.bf16 %v443, %v442
    %v447 = vpack.c.bf16 %v445, %v444
    %448 = vmatprep.subr.bf16.mxu0 0
    %449 = vmatpush1.bf16.msra.mxu0 %v351
    %450 = vmatprep.subr.bf16.mxu0 0
    %451 = vmatpush1.bf16.msra.mxu0 %v350
    %452 = vmatprep.subr.bf16.mxu0 0
    %453 = vmatpush1.bf16.msra.mxu0 %v349
    %454 = vmatprep.subr.bf16.mxu0 0
    %455 = vmatpush1.bf16.msra.mxu0 %v348
    %456 = vmatprep.subr.bf16.mxu0 0
    %457 = vmatpush1.bf16.msra.mxu0 %v347
    %458 = vmatprep.subr.bf16.mxu0 0
    %459 = vmatpush1.bf16.msra.mxu0 %v346
    %460 = vmatprep.subr.bf16.mxu0 0
    %461 = vmatpush1.bf16.msra.mxu0 %v345
    %462 = vmatprep.subr.bf16.mxu0 0
    %463 = vmatpush1.bf16.msra.mxu0 %v344
    %464 = vmatprep.subr.bf16.mxu0 0
    %465 = vmatpush2.bf16.msra.mxu0 0
    %466 = vmatprep.subr.bf16.mxu0 0
    %467 = vmatpush2.bf16.msra.mxu0 0
    %468 = vmatprep.subr.bf16.mxu0 0
    %469 = vmatpush2.bf16.msra.mxu0 0
    %470 = vmatprep.subr.bf16.mxu0 0
    %471 = vmatpush2.bf16.msra.mxu0 0
    %472 = vmatprep.subr.bf16.mxu0 0
    %473 = vmatpush2.bf16.msra.mxu0 0
    %474 = vmatprep.subr.bf16.mxu0 0
    %475 = vmatpush2.bf16.msra.mxu0 0
    %476 = vmatprep.subr.bf16.mxu0 0
    %477 = vmatpush2.bf16.msra.mxu0 0
    %478 = vmatprep.subr.bf16.mxu0 0
    %479 = vmatpush2.bf16.msra.mxu0 0
    %480 = vmatprep.mubr.bf16.mxu0 0
    %481 = vmatmul.mubr.bf16.gmra.mxu0 %v446
    %v482 = vpop.f32.mrf.mxu0
    %v483 = vadd.f32 %v310, %v482
    %v484 = vpop.f32.mrf.mxu0
    %v485 = vpop.f32.mrf.mxu0
    %v486 = vadd.f32 %v310, %v485
    %v487 = vpop.f32.mrf.mxu0
    %488 = vmatprep.mubr.bf16.mxu0 0
    %489 = vmatmul.mubr.bf16.gmra.mxu0 %v447
    %v490 = vpop.f32.mrf.mxu0
    %v491 = vadd.f32 %v310, %v490
    %v492 = vpop.f32.mrf.mxu0
    %v493 = vpop.f32.mrf.mxu0
    %v494 = vadd.f32 %v310, %v493
    %v495 = vpop.f32.mrf.mxu0
    %496 = vdwg.mxu0
    %v497 = vmax.f32 %v483, 0.0
    %v498 = vmax.f32 %v486, 0.0
    %v499 = vmax.f32 %v491, 0.0
    %v500 = vmax.f32 %v494, 0.0
    %v501 = vmul.f32 %v497, %v417
    %v502 = vmul.f32 %v498, %v417
    %503 = vadd.xlane.f32.xlu0 %v501
    %v504 = vpop.xlane.xlu0 %503
    %505 = vadd.xlane.f32.xlu0 %v502
    %v506 = vpop.xlane.xlu0 %505
    %v507 = vadd.f32 %v504, %v425
    %v508 = vadd.f32 %v506, %v425
    %v509 = vmul.f32 %v499, %v417
    %v510 = vmul.f32 %v500, %v417
    %511 = vadd.xlane.f32.xlu0 %v509
    %v512 = vpop.xlane.xlu0 %511
    %513 = vadd.xlane.f32.xlu0 %v510
    %v514 = vpop.xlane.xlu0 %513
    %v515 = vadd.f32 %v512, %v425
    %v516 = vadd.f32 %v514, %v425
    %v517 = vadd.f32 %v124, %v227
    %v518 = vadd.f32 %v127, %v230
    %v519 = vadd.f32 %v517, %v289
    %v520 = vadd.f32 %v518, %v289
    %v521 = vadd.f32 %v517, %v293
    %v522 = vadd.f32 %v518, %v293
    %v523 = vmax.f32 %v519, 0.0
    %v524 = vmax.f32 %v520, 0.0
    %v525 = vmax.f32 %v521, 0.0
    %v526 = vmax.f32 %v522, 0.0
    %v527 = vpack.c.bf16 %v524, %v523
    %v528 = vpack.c.bf16 %v526, %v525
    %529 = vmatprep.subr.bf16.mxu0 0
    %530 = vmatpush1.bf16.msra.mxu0 %v351
    %531 = vmatprep.subr.bf16.mxu0 0
    %532 = vmatpush1.bf16.msra.mxu0 %v350
    %533 = vmatprep.subr.bf16.mxu0 0
    %534 = vmatpush1.bf16.msra.mxu0 %v349
    %535 = vmatprep.subr.bf16.mxu0 0
    %536 = vmatpush1.bf16.msra.mxu0 %v348
    %537 = vmatprep.subr.bf16.mxu0 0
    %538 = vmatpush1.bf16.msra.mxu0 %v347
    %539 = vmatprep.subr.bf16.mxu0 0
    %540 = vmatpush1.bf16.msra.mxu0 %v346
    %541 = vmatprep.subr.bf16.mxu0 0
    %542 = vmatpush1.bf16.msra.mxu0 %v345
    %543 = vmatprep.subr.bf16.mxu0 0
    %544 = vmatpush1.bf16.msra.mxu0 %v344
    %545 = vmatprep.subr.bf16.mxu0 0
    %546 = vmatpush2.bf16.msra.mxu0 0
    %547 = vmatprep.subr.bf16.mxu0 0
    %548 = vmatpush2.bf16.msra.mxu0 0
    %549 = vmatprep.subr.bf16.mxu0 0
    %550 = vmatpush2.bf16.msra.mxu0 0
    %551 = vmatprep.subr.bf16.mxu0 0
    %552 = vmatpush2.bf16.msra.mxu0 0
    %553 = vmatprep.subr.bf16.mxu0 0
    %554 = vmatpush2.bf16.msra.mxu0 0
    %555 = vmatprep.subr.bf16.mxu0 0
    %556 = vmatpush2.bf16.msra.mxu0 0
    %557 = vmatprep.subr.bf16.mxu0 0
    %558 = vmatpush2.bf16.msra.mxu0 0
    %559 = vmatprep.subr.bf16.mxu0 0
    %560 = vmatpush2.bf16.msra.mxu0 0
    %561 = vmatprep.mubr.bf16.mxu0 0
    %562 = vmatmul.mubr.bf16.gmra.mxu0 %v527
    %v563 = vpop.f32.mrf.mxu0
    %v564 = vadd.f32 %v310, %v563
    %v565 = vpop.f32.mrf.mxu0
    %v566 = vpop.f32.mrf.mxu0
    %v567 = vadd.f32 %v310, %v566
    %v568 = vpop.f32.mrf.mxu0
    %569 = vmatprep.mubr.bf16.mxu0 0
    %570 = vmatmul.mubr.bf16.gmra.mxu0 %v528
    %v571 = vpop.f32.mrf.mxu0
    %v572 = vadd.f32 %v310, %v571
    %v573 = vpop.f32.mrf.mxu0
    %v574 = vpop.f32.mrf.mxu0
    %v575 = vadd.f32 %v310, %v574
    %v576 = vpop.f32.mrf.mxu0
    %577 = vdwg.mxu0
    %v578 = vmax.f32 %v564, 0.0
    %v579 = vmax.f32 %v567, 0.0
    %v580 = vmax.f32 %v572, 0.0
    %v581 = vmax.f32 %v575, 0.0
    %v582 = vmul.f32 %v578, %v417
    %v583 = vmul.f32 %v579, %v417
    %584 = vadd.xlane.f32.xlu0 %v582
    %v585 = vpop.xlane.xlu0 %584
    %586 = vadd.xlane.f32.xlu0 %v583
    %v587 = vpop.xlane.xlu0 %586
    %v588 = vadd.f32 %v585, %v425
    %v589 = vadd.f32 %v587, %v425
    %v590 = vmul.f32 %v580, %v417
    %v591 = vmul.f32 %v581, %v417
    %592 = vadd.xlane.f32.xlu0 %v590
    %v593 = vpop.xlane.xlu0 %592
    %594 = vadd.xlane.f32.xlu0 %v591
    %v595 = vpop.xlane.xlu0 %594
    %v596 = vadd.f32 %v593, %v425
    %v597 = vadd.f32 %v595, %v425
    %v598 = vadd.f32 %v124, %v235
    %v599 = vadd.f32 %v127, %v238
    %v600 = vadd.f32 %v598, %v289
    %v601 = vadd.f32 %v599, %v289
    %v602 = vadd.f32 %v598, %v293
    %v603 = vadd.f32 %v599, %v293
    %v604 = vmax.f32 %v600, 0.0
    %v605 = vmax.f32 %v601, 0.0
    %v606 = vmax.f32 %v602, 0.0
    %v607 = vmax.f32 %v603, 0.0
    %v608 = vpack.c.bf16 %v605, %v604
    %v609 = vpack.c.bf16 %v607, %v606
    %610 = vmatprep.subr.bf16.mxu0 0
    %611 = vmatpush1.bf16.msra.mxu0 %v351
    %612 = vmatprep.subr.bf16.mxu0 0
    %613 = vmatpush1.bf16.msra.mxu0 %v350
    %614 = vmatprep.subr.bf16.mxu0 0
    %615 = vmatpush1.bf16.msra.mxu0 %v349
    %616 = vmatprep.subr.bf16.mxu0 0
    %617 = vmatpush1.bf16.msra.mxu0 %v348
    %618 = vmatprep.subr.bf16.mxu0 0
    %619 = vmatpush1.bf16.msra.mxu0 %v347
    %620 = vmatprep.subr.bf16.mxu0 0
    %621 = vmatpush1.bf16.msra.mxu0 %v346
    %622 = vmatprep.subr.bf16.mxu0 0
    %623 = vmatpush1.bf16.msra.mxu0 %v345
    %624 = vmatprep.subr.bf16.mxu0 0
    %625 = vmatpush1.bf16.msra.mxu0 %v344
    %626 = vmatprep.subr.bf16.mxu0 0
    %627 = vmatpush2.bf16.msra.mxu0 0
    %628 = vmatprep.subr.bf16.mxu0 0
    %629 = vmatpush2.bf16.msra.mxu0 0
    %630 = vmatprep.subr.bf16.mxu0 0
    %631 = vmatpush2.bf16.msra.mxu0 0
    %632 = vmatprep.subr.bf16.mxu0 0
    %633 = vmatpush2.bf16.msra.mxu0 0
    %634 = vmatprep.subr.bf16.mxu0 0
    %635 = vmatpush2.bf16.msra.mxu0 0
    %636 = vmatprep.subr.bf16.mxu0 0
    %637 = vmatpush2.bf16.msra.mxu0 0
    %638 = vmatprep.subr.bf16.mxu0 0
    %639 = vmatpush2.bf16.msra.mxu0 0
    %640 = vmatprep.subr.bf16.mxu0 0
    %641 = vmatpush2.bf16.msra.mxu0 0
    %642 = vmatprep.mubr.bf16.mxu0 0
    %643 = vmatmul.mubr.bf16.gmra.mxu0 %v608
    %v644 = vpop.f32.mrf.mxu0
    %v645 = vadd.f32 %v310, %v644
    %v646 = vpop.f32.mrf.mxu0
    %v647 = vpop.f32.mrf.mxu0
    %v648 = vadd.f32 %v310, %v647
    %v649 = vpop.f32.mrf.mxu0
    %650 = vmatprep.mubr.bf16.mxu0 0
    %651 = vmatmul.mubr.bf16.gmra.mxu0 %v609
    %v652 = vpop.f32.mrf.mxu0
    %v653 = vadd.f32 %v310, %v652
    %v654 = vpop.f32.mrf.mxu0
    %v655 = vpop.f32.mrf.mxu0
    %v656 = vadd.f32 %v310, %v655
    %v657 = vpop.f32.mrf.mxu0
    %658 = vdwg.mxu0
    %v659 = vmax.f32 %v645, 0.0
    %v660 = vmax.f32 %v648, 0.0
    %v661 = vmax.f32 %v653, 0.0
    %v662 = vmax.f32 %v656, 0.0
    %v663 = vmul.f32 %v659, %v417
    %v664 = vmul.f32 %v660, %v417
    %665 = vadd.xlane.f32.xlu0 %v663
    %v666 = vpop.xlane.xlu0 %665
    %667 = vadd.xlane.f32.xlu0 %v664
    %v668 = vpop.xlane.xlu0 %667
    %v669 = vadd.f32 %v666, %v425
    %v670 = vadd.f32 %v668, %v425
    %v671 = vmul.f32 %v661, %v417
    %v672 = vmul.f32 %v662, %v417
    %673 = vadd.xlane.f32.xlu0 %v671
    %v674 = vpop.xlane.xlu0 %673
    %675 = vadd.xlane.f32.xlu0 %v672
    %v676 = vpop.xlane.xlu0 %675
    %v677 = vadd.f32 %v674, %v425
    %v678 = vadd.f32 %v676, %v425
    %vm679 = vcmask 7168
    %v680 = vsel %vm679, %v426, %v434
    %v681 = vsel %vm679, %v427, %v435
    %vm682 = vcmask 15360
    %v683 = vsel %vm682, %v680, %v507
    %v684 = vsel %vm682, %v681, %v508
    %vm685 = vcmask 23552
    %v686 = vsel %vm685, %v683, %v515
    %v687 = vsel %vm685, %v684, %v516
    %vm688 = vcmask 31744
    %v689 = vsel %vm688, %v686, %v588
    %v690 = vsel %vm688, %v687, %v589
    %vm691 = vcmask 39936
    %v692 = vsel %vm691, %v689, %v596
    %v693 = vsel %vm691, %v690, %v597
    %vm694 = vcmask 48128
    %v695 = vsel %vm694, %v692, %v669
    %v696 = vsel %vm694, %v693, %v670
    %vm697 = vcmask 56320
    %v698 = vsel %vm697, %v695, %v677
    %v699 = vsel %vm697, %v696, %v678
    %700 = vst.msk [vmem:[%s15] sm:$0xff] %vm159, %v698
    %701 = vst.msk [vmem:[%s15 + $0x8] sm:$0xff] %vm159, %v699
    %v702 = vlaneseq
    %v703 = vand.u32 %v702, 127
    %v704 = vsel %vm159, %v698, -inf
    %705 = vmax.xlane.f32.xlu0 %v704
    %v706 = vpop.xlane.xlu0 %705
    %v707 = vsel %vm159, %v699, -inf
    %708 = vmax.xlane.f32.xlu0 %v707
    %v709 = vpop.xlane.xlu0 %708
    %vm710 = vcmp.eq.f32.partialorder %v698, %v706
    %vm711 = vcmp.eq.f32.partialorder %v699, %v709
    %v712 = vsel %vm710, %v703, 8
    %v713 = vsel %vm711, %v703, 8
    %v714 = vsel %vm159, %v712, 2147483647
    %v715 = vand.u32 %v714, 65535
    %v716 = vshra.s32 %v714, 16
    %v717 = vcvt.s32.f32 %v715
    %v718 = vcvt.s32.f32 %v716
    %719 = vmin.xlane.f32.xlu0 %v718
    %v720 = vpop.xlane.xlu0 %719
    %vm721 = vcmp.eq.f32.partialorder %v718, %v720
    %v722 = vsel %vm721, %v717, inf
    %723 = vmin.xlane.f32.xlu0 %v722
    %v724 = vpop.xlane.xlu0 %723
    %v725 = vcvt.f32.s32 %v724
    %v726 = vcvt.f32.s32 %v720
    %v727 = vshll.u32 %v726, 16
    %v728 = vadd.s32 %v727, %v725
    %v729 = vsel %vm159, %v713, 2147483647
    %v730 = vand.u32 %v729, 65535
    %v731 = vshra.s32 %v729, 16
    %v732 = vcvt.s32.f32 %v730
    %v733 = vcvt.s32.f32 %v731
    %734 = vmin.xlane.f32.xlu0 %v733
    %v735 = vpop.xlane.xlu0 %734
    %vm736 = vcmp.eq.f32.partialorder %v733, %v735
    %v737 = vsel %vm736, %v732, inf
    %738 = vmin.xlane.f32.xlu0 %v737
    %v739 = vpop.xlane.xlu0 %738
    %v740 = vcvt.f32.s32 %v739
    %v741 = vcvt.f32.s32 %v735
    %v742 = vshll.u32 %v741, 16
    %v743 = vadd.s32 %v742, %v740
    %744 = vst.msk [vmem:[%s17] sm:$0xff] %vm679, %v728
    %745 = vst.msk [vmem:[%s17 + $0x8] sm:$0xff] %vm679, %v743
    %v746 = vld [vmem:[%s9] sm:$0xf]
    %v747 = vld [vmem:[%s9 + $0x4] sm:$0xf]
    %v748 = vld [vmem:[%s10] sm:$0x1]
    %v750 = vlaneseq
    %v751 = vshrl.u32 %v750, 7
    %v752 = vsub.s32 0, %v751
    %v753 = vrot.slane %v748, %v752
    %v757 = vunpack.c.l.b16 %v746
    %v758 = vunpack.c.l.b16 %v747
    %v759 = vpack.c.b16 %v758, %v757
    %761 = vmatprep.subr.bf16.mxu0 0
    %762 = vmatpush1.bf16.msra.mxu0 0
    %763 = vmatprep.subr.bf16.mxu0 0
    %764 = vmatpush1.bf16.msra.mxu0 0
    %765 = vmatprep.subr.bf16.mxu0 0
    %766 = vmatpush1.bf16.msra.mxu0 0
    %767 = vmatprep.subr.bf16.mxu0 0
    %768 = vmatpush1.bf16.msra.mxu0 0
    %769 = vmatprep.subr.bf16.mxu0 0
    %770 = vmatpush1.bf16.msra.mxu0 0
    %771 = vmatprep.subr.bf16.mxu0 0
    %772 = vmatpush1.bf16.msra.mxu0 0
    %773 = vmatprep.subr.bf16.mxu0 0
    %774 = vmatpush1.bf16.msra.mxu0 0
    %775 = vmatprep.subr.bf16.mxu0 0
    %776 = vmatpush1.bf16.msra.mxu0 %v759
    %777 = vmatprep.subr.bf16.mxu0 0
    %778 = vmatpush2.bf16.msra.mxu0 0
    %779 = vmatprep.subr.bf16.mxu0 0
    %780 = vmatpush2.bf16.msra.mxu0 0
    %781 = vmatprep.subr.bf16.mxu0 0
    %782 = vmatpush2.bf16.msra.mxu0 0
    %783 = vmatprep.subr.bf16.mxu0 0
    %784 = vmatpush2.bf16.msra.mxu0 0
    %785 = vmatprep.subr.bf16.mxu0 0
    %786 = vmatpush2.bf16.msra.mxu0 0
    %787 = vmatprep.subr.bf16.mxu0 0
    %788 = vmatpush2.bf16.msra.mxu0 0
    %789 = vmatprep.subr.bf16.mxu0 0
    %790 = vmatpush2.bf16.msra.mxu0 0
    %791 = vmatprep.subr.bf16.mxu0 0
    %792 = vmatpush2.bf16.msra.mxu0 0
    %793 = vmatprep.mubr.bf16.mxu0 0
    %794 = vmatmul.mubr.bf16.gmra.mxu0 %v87
    %v795 = vpop.f32.mrf.mxu0
    %v796 = vadd.f32 %v753, %v795
    %v797 = vpop.f32.mrf.mxu0
    %v798 = vpop.f32.mrf.mxu0
    %v799 = vadd.f32 %v753, %v798
    %v800 = vpop.f32.mrf.mxu0
    %801 = vdwg.mxu0
    %v802 = vmax.f32 %v796, 0.0
    %v803 = vmax.f32 %v799, 0.0
    %v804 = vpack.c.bf16 %v803, %v802
    %v805 = vld [vmem:[%s11] sm:$0xf]
    %v806 = vld [vmem:[%s11 + $0x4] sm:$0xf]
    %v807 = vld [vmem:[%s11 + $0x8] sm:$0xf]
    %v808 = vld [vmem:[%s11 + $0xc] sm:$0xf]
    %v809 = vld [vmem:[%s11 + $0x10] sm:$0xf]
    %v810 = vld [vmem:[%s11 + $0x14] sm:$0xf]
    %v811 = vld [vmem:[%s11 + $0x18] sm:$0xf]
    %v812 = vld [vmem:[%s11 + $0x1c] sm:$0xf]
    %v813 = vld [vmem:[%s11 + $0x20] sm:$0xf]
    %v814 = vld [vmem:[%s11 + $0x24] sm:$0xf]
    %v815 = vld [vmem:[%s11 + $0x28] sm:$0xf]
    %v816 = vld [vmem:[%s11 + $0x2c] sm:$0xf]
    %v817 = vld [vmem:[%s11 + $0x30] sm:$0xf]
    %v818 = vld [vmem:[%s11 + $0x34] sm:$0xf]
    %v819 = vld [vmem:[%s11 + $0x38] sm:$0xf]
    %v820 = vld [vmem:[%s11 + $0x3c] sm:$0xf]
    %v821 = vld [vmem:[%s12] sm:$0x1]
    %v823 = vlaneseq
    %v824 = vshrl.u32 %v823, 7
    %v825 = vsub.s32 0, %v824
    %v826 = vrot.slane %v821, %v825
    %v844 = vunpack.c.l.b16 %v805
    %v845 = vunpack.c.l.b16 %v806
    %v846 = vunpack.c.l.b16 %v807
    %v847 = vunpack.c.l.b16 %v808
    %v848 = vunpack.c.l.b16 %v809
    %v849 = vunpack.c.l.b16 %v810
    %v850 = vunpack.c.l.b16 %v811
    %v851 = vunpack.c.l.b16 %v812
    %v852 = vunpack.c.l.b16 %v813
    %v853 = vunpack.c.l.b16 %v814
    %v854 = vunpack.c.l.b16 %v815
    %v855 = vunpack.c.l.b16 %v816
    %v856 = vunpack.c.l.b16 %v817
    %v857 = vunpack.c.l.b16 %v818
    %v858 = vunpack.c.l.b16 %v819
    %v859 = vunpack.c.l.b16 %v820
    %v860 = vpack.c.b16 %v845, %v844
    %v861 = vpack.c.b16 %v847, %v846
    %v862 = vpack.c.b16 %v849, %v848
    %v863 = vpack.c.b16 %v851, %v850
    %v864 = vpack.c.b16 %v853, %v852
    %v865 = vpack.c.b16 %v855, %v854
    %v866 = vpack.c.b16 %v857, %v856
    %v867 = vpack.c.b16 %v859, %v858
    %876 = vmatprep.subr.bf16.mxu0 0
    %877 = vmatpush1.bf16.msra.mxu0 %v867
    %878 = vmatprep.subr.bf16.mxu0 0
    %879 = vmatpush1.bf16.msra.mxu0 %v866
    %880 = vmatprep.subr.bf16.mxu0 0
    %881 = vmatpush1.bf16.msra.mxu0 %v865
    %882 = vmatprep.subr.bf16.mxu0 0
    %883 = vmatpush1.bf16.msra.mxu0 %v864
    %884 = vmatprep.subr.bf16.mxu0 0
    %885 = vmatpush1.bf16.msra.mxu0 %v863
    %886 = vmatprep.subr.bf16.mxu0 0
    %887 = vmatpush1.bf16.msra.mxu0 %v862
    %888 = vmatprep.subr.bf16.mxu0 0
    %889 = vmatpush1.bf16.msra.mxu0 %v861
    %890 = vmatprep.subr.bf16.mxu0 0
    %891 = vmatpush1.bf16.msra.mxu0 %v860
    %892 = vmatprep.subr.bf16.mxu0 0
    %893 = vmatpush2.bf16.msra.mxu0 0
    %894 = vmatprep.subr.bf16.mxu0 0
    %895 = vmatpush2.bf16.msra.mxu0 0
    %896 = vmatprep.subr.bf16.mxu0 0
    %897 = vmatpush2.bf16.msra.mxu0 0
    %898 = vmatprep.subr.bf16.mxu0 0
    %899 = vmatpush2.bf16.msra.mxu0 0
    %900 = vmatprep.subr.bf16.mxu0 0
    %901 = vmatpush2.bf16.msra.mxu0 0
    %902 = vmatprep.subr.bf16.mxu0 0
    %903 = vmatpush2.bf16.msra.mxu0 0
    %904 = vmatprep.subr.bf16.mxu0 0
    %905 = vmatpush2.bf16.msra.mxu0 0
    %906 = vmatprep.subr.bf16.mxu0 0
    %907 = vmatpush2.bf16.msra.mxu0 0
    %908 = vmatprep.mubr.bf16.mxu0 0
    %909 = vmatmul.mubr.bf16.gmra.mxu0 %v804
    %v910 = vpop.f32.mrf.mxu0
    %v911 = vadd.f32 %v826, %v910
    %v912 = vpop.f32.mrf.mxu0
    %v913 = vpop.f32.mrf.mxu0
    %v914 = vadd.f32 %v826, %v913
    %v915 = vpop.f32.mrf.mxu0
    %916 = vdwg.mxu0
    %v917 = vmax.f32 %v911, 0.0
    %v918 = vmax.f32 %v914, 0.0
    %v919 = vld [vmem:[%s13] sm:$0x1]
    %v921 = vlaneseq
    %v922 = vshrl.u32 %v921, 7
    %v923 = vsub.s32 0, %v922
    %v924 = vrot.slane %v919, %v923
    %v926 = vmul.f32 %v917, %v924
    %v927 = vmul.f32 %v918, %v924
    %928 = vadd.xlane.f32.xlu0 %v926
    %v929 = vpop.xlane.xlu0 %928
    %930 = vadd.xlane.f32.xlu0 %v927
    %v931 = vpop.xlane.xlu0 %930
    %s932 = sld [smem:[#allocation2 + $0x1]]
    %v933 = vstv %s932
    %v934 = vadd.f32 %v929, %v933
    %v935 = vadd.f32 %v931, %v933
    %936 = vst.msk [vmem:[%s16] sm:$0xff] %vm679, %v934
    %937 = vst.msk [vmem:[%s16 + $0x8] sm:$0xff] %vm679, %v935
    // Predicated region
    $region66: #{low_level_net_forward.1} parent=1 // pred_check
      _
    $region67: #{low_level_net_forward.1} parent=1 // pred_check_branch
      %939 = sbr.rel (0) target = $region69
    $region68: #{low_level_net_forward.1} parent=1 // pred_region
      _
    $region69: #{low_level_net_forward.1} parent=1 // pred_fallthru
      _
    // Predicated region
    $region70: #{low_level_net_forward.1} parent=1 // pred_check
      _
    $region71: #{low_level_net_forward.1} parent=1 // pred_check_branch
      %941 = sbr.rel (0) target = $region73
    $region72: #{low_level_net_forward.1} parent=1 // pred_region
      _
    $region73: #{low_level_net_forward.1} parent=1 // pred_fallthru
      _
    // Predicated region
    $region74: #{low_level_net_forward.1} parent=1 // pred_check
      _
    $region75: #{low_level_net_forward.1} parent=1 // pred_check_branch
      %943 = sbr.rel (0) target = $region77
    $region76: #{low_level_net_forward.1} parent=1 // pred_region
      _
    $region77: #{low_level_net_forward.1} parent=1 // pred_fallthru
      _
    // Predicated region
    $region78: #{low_level_net_forward.1} parent=1 // pred_check
      _
    $region79: #{low_level_net_forward.1} parent=1 // pred_check_branch
      %945 = sbr.rel (0) target = $region81
    $region80: #{low_level_net_forward.1} parent=1 // pred_region
      _
    $region81: #{low_level_net_forward.1} parent=1 // pred_fallthru
      _
    // Predicated region
    $region82: #{low_level_net_forward.1} parent=1 // pred_check
      _
    $region83: #{low_level_net_forward.1} parent=1 // pred_check_branch
      %947 = sbr.rel (0) target = $region85
    $region84: #{low_level_net_forward.1} parent=1 // pred_region
      _
    $region85: #{low_level_net_forward.1} parent=1 // pred_fallthru
      _
    // Predicated region
    $region86: #{low_level_net_forward.1} parent=1 // pred_check
      _
    $region87: #{low_level_net_forward.1} parent=1 // pred_check_branch
      %949 = sbr.rel (0) target = $region89
    $region88: #{low_level_net_forward.1} parent=1 // pred_region
      _
    $region89: #{low_level_net_forward.1} parent=1 // pred_fallthru
      _
    %950 = vsyncpa [#allocation3], 1

</llo_original>
